<compile_context>
chip_gen: v7x
topology: tpu7x:2x2x1
jax: 0.10.0
libtpu: 0.0.40
codegen_flags: <defaults>
</compile_context>

<pallas_src>
import math
import functools

import jax
import jax.numpy as jnp
from jax.experimental import pallas as pl
from jax.experimental.pallas import tpu as pltpu


def _gcn_kernel(*refs, theta, alpha, variant, residual):
    # Ref order:
    #   adj(tm,tk) bf16, x(tk,F) bf16, h0(tm,F) bf16, w_top(F,Fo) bf16,
    #   [w_bot(F,Fo) bf16 if variant], [resid(tm,F) f32 if residual],
    #   out(tm,Fo) f32, acc(tm,F) f32 scratch
    adj_ref, x_ref, h0_ref, wtop_ref = refs[0], refs[1], refs[2], refs[3]
    pos = 4
    wbot_ref = None
    resid_ref = None
    if variant:
        wbot_ref = refs[pos]
        pos += 1
    if residual:
        resid_ref = refs[pos]
        pos += 1
    o_ref = refs[pos]
    acc_ref = refs[pos + 1]

    k = pl.program_id(1)

    @pl.when(k == 0)
    def _():
        acc_ref[...] = jnp.zeros_like(acc_ref)

    # hi += adj_tile @ x_tile   (bf16 operands, f32 MXU accumulation)
    acc_ref[...] += jnp.dot(adj_ref[...], x_ref[...],
                            preferred_element_type=jnp.float32)

    @pl.when(k == pl.num_programs(1) - 1)
    def _():
        hi = acc_ref[...]                                   # f32
        h0 = h0_ref[...].astype(jnp.float32)                # f32
        r = (1.0 - alpha) * hi + alpha * h0                 # f32 blend

        if variant:
            # support = cat([hi, h0], 1);  support @ W == hi@W_top + h0@W_bot
            # (avoids materializing the concatenated tile)
            sw = jnp.dot(hi.astype(wtop_ref.dtype), wtop_ref[...],
                         preferred_element_type=jnp.float32)
            sw = sw + jnp.dot(h0_ref[...], wbot_ref[...],
                              preferred_element_type=jnp.float32)
        else:
            # support == r
            sw = jnp.dot(r.astype(wtop_ref.dtype), wtop_ref[...],
                         preferred_element_type=jnp.float32)

        out = theta * sw + (1.0 - theta) * r
        if residual:
            out = out + resid_ref[...].astype(jnp.float32)
        o_ref[...] = out.astype(o_ref.dtype)


def graph_convolution(inp, adj, h0, weight, *, lamda, alpha, l,
                      variant=False, residual=False, tm=256, tk=256):
    """Pallas implementation of GraphConvolution.forward."""
    N, F_in = inp.shape
    F_out = weight.shape[1]
    expected_w_rows = 2 * F_in if variant else F_in
    assert weight.shape[0] == expected_w_rows, "weight rows mismatch"
    # theta*(support@W) + (1-theta)*r (and the residual add) require F_out==F_in,
    # exactly as in the PyTorch module.
    assert F_out == F_in, "GraphConvolution requires out_features == in_features"

    tm = min(tm, N)
    tk = min(tk, N)
    assert N % tm == 0 and N % tk == 0, "N must be divisible by tm and tk"

    theta = math.log(lamda / l + 1.0)

    # bf16 HBM streams; f32 accumulation inside the kernel.
    adj_bf = adj.astype(jnp.bfloat16)
    x_bf = inp.astype(jnp.bfloat16)
    h0_bf = h0.astype(jnp.bfloat16)
    if variant:
        w_top = weight[:F_in].astype(jnp.bfloat16)
        w_bot = weight[F_in:].astype(jnp.bfloat16)
    else:
        w_top = weight.astype(jnp.bfloat16)
        w_bot = None

    grid = (N // tm, N // tk)     # (row tiles: parallel, K reduction: arbitrary)

    in_specs = [
        pl.BlockSpec((tm, tk), lambda i, k: (i, k)),        # adj tile
        pl.BlockSpec((tk, F_in), lambda i, k: (k, 0)),      # x tile (K-streamed)
        pl.BlockSpec((tm, F_in), lambda i, k: (i, 0)),      # h0 row tile
        pl.BlockSpec((F_in, F_out), lambda i, k: (0, 0)),   # W (or W_top)
    ]
    operands = [adj_bf, x_bf, h0_bf, w_top]
    if variant:
        in_specs.append(pl.BlockSpec((F_in, F_out), lambda i, k: (0, 0)))
        operands.append(w_bot)
    if residual:
        # dedicated f32 residual row tile (keeps full precision for the add)
        in_specs.append(pl.BlockSpec((tm, F_in), lambda i, k: (i, 0)))
        operands.append(inp)

    flops = 2 * N * N * F_in + 2 * N * expected_w_rows * F_out
    bytes_accessed = (2 * N * N            # adj (bf16)
                      + 2 * N * F_in * 2   # x + h0 (bf16)
                      + 2 * expected_w_rows * F_out
                      + 4 * N * F_out
                      + (4 * N * F_in if residual else 0))

    kernel = functools.partial(_gcn_kernel, theta=theta, alpha=float(alpha),
                               variant=variant, residual=residual)

    return pl.pallas_call(
        kernel,
        out_shape=jax.ShapeDtypeStruct((N, F_out), inp.dtype),
        grid_spec=pltpu.PrefetchScalarGridSpec(
            num_scalar_prefetch=0,
            grid=grid,
            in_specs=in_specs,
            out_specs=pl.BlockSpec((tm, F_out), lambda i, k: (i, 0)),
            scratch_shapes=[pltpu.VMEM((tm, F_in), jnp.float32)],
        ),
        compiler_params=pltpu.CompilerParams(
            dimension_semantics=("parallel", "arbitrary"),
            vmem_limit_bytes=32 * 1024 * 1024,
        ),
        cost_estimate=pl.CostEstimate(flops=flops, transcendentals=0,
                                      bytes_accessed=bytes_accessed),
    )(*operands)


def _reference(inp, adj, h0, weight, *, lamda, alpha, l,
               variant=False, residual=False):
    theta = math.log(lamda / l + 1.0)
    hi = adj @ inp
    if variant:
        support = jnp.concatenate([hi, h0], axis=1)
        r = (1.0 - alpha) * hi + alpha * h0
    else:
        support = (1.0 - alpha) * hi + alpha * h0
        r = support
    out = theta * (support @ weight) + (1.0 - theta) * r
    if residual:
        out = out + inp
    return out


if __name__ == "__main__":
    N = 512          # number of graph nodes (exercises a (2, 2) grid)
    F = 128          # in_features == out_features (GCNII hidden layer)
    lamda, alpha, l = 0.5, 0.1, 2

    key = jax.random.PRNGKey(0)
    k_x, k_adj, k_h0, k_w1, k_w2 = jax.random.split(key, 5)

    x = jax.random.normal(k_x, (N, F), dtype=jnp.float32)
    adj = jax.random.uniform(k_adj, (N, N), dtype=jnp.float32)
    adj = adj / jnp.sum(adj, axis=1, keepdims=True)     # row-normalized dense adj
    h0 = jax.random.normal(k_h0, (N, F), dtype=jnp.float32)

    stdv = 1.0 / math.sqrt(F)
    w_plain = jax.random.uniform(k_w1, (F, F), dtype=jnp.float32,
                                 minval=-stdv, maxval=stdv)
    w_variant = jax.random.uniform(k_w2, (2 * F, F), dtype=jnp.float32,
                                   minval=-stdv, maxval=stdv)

    # Config A: module defaults (variant=False, residual=False)
    out_a = graph_convolution(x, adj, h0, w_plain, lamda=lamda, alpha=alpha,
                              l=l, variant=False, residual=False,
                              tm=256, tk=256)
    out_a = jax.block_until_ready(out_a)
    ref_a = _reference(x, adj, h0, w_plain, lamda=lamda, alpha=alpha, l=l,
                       variant=False, residual=False)
    assert out_a.shape == (N, F)
    # bf16 input streams => loosened tolerance vs the f32 reference.
    assert jnp.allclose(out_a, ref_a, atol=2e-2, rtol=2e-2), "mismatch (plain)"

    # Config B: variant=True, residual=True (exercises the split-W + resid path)
    out_b = graph_convolution(x, adj, h0, w_variant, lamda=lamda, alpha=alpha,
                              l=l, variant=True, residual=True,
                              tm=256, tk=256)
    out_b = jax.block_until_ready(out_b)
    ref_b = _reference(x, adj, h0, w_variant, lamda=lamda, alpha=alpha, l=l,
                       variant=True, residual=True)
    assert out_b.shape == (N, F)
    assert jnp.allclose(out_b, ref_b, atol=2e-2, rtol=2e-2), "mismatch (variant)"

    print("KERNEL_OK")
</pallas_src>

<mosaic_0001>
module attributes {stable_mosaic.version = 11 : i64} {
  func.func @_gcn_kernel(%arg0: i32, %arg1: i32, %arg2: memref<256x256xbf16, #tpu.memory_space<vmem>>, %arg3: memref<256x128xbf16, #tpu.memory_space<vmem>>, %arg4: memref<256x128xbf16, #tpu.memory_space<vmem>>, %arg5: memref<128x128xbf16, #tpu.memory_space<vmem>>, %arg6: memref<256x128xf32, #tpu.memory_space<vmem>>, %arg7: memref<256x128xf32, #tpu.memory_space<vmem>>) attributes {dimension_semantics = [#tpu.dimension_semantics<parallel>, #tpu.dimension_semantics<arbitrary>], iteration_bounds = array<i64: 2, 2>, scalar_prefetch = 0 : i64, scratch_operands = 1 : i64, tpu.core_type = #tpu.core_type<tc>, window_params = [{transform_indices = @transform_0, window_bounds = array<i64: 256, 256>}, {transform_indices = @transform_1, window_bounds = array<i64: 256, 128>}, {transform_indices = @transform_2, window_bounds = array<i64: 256, 128>}, {pipeline_mode = #tpu.pipeline_mode<synchronous>, transform_indices = @transform_3, window_bounds = array<i64: 128, 128>}, {transform_indices = @transform_4, window_bounds = array<i64: 256, 128>}]} {
    %c0_i32 = arith.constant 0 : i32
    %0 = arith.cmpi eq, %arg1, %c0_i32 : i32
    %1 = arith.extui %0 : i1 to i32
    %c0_i32_0 = arith.constant 0 : i32
    %2 = arith.cmpi ne, %1, %c0_i32_0 : i32
    scf.if %2 {
      %cst_9 = arith.constant 0.000000e+00 : f32
      %12 = vector.broadcast %cst_9 : f32 to vector<256x128xf32>
      %c0_10 = arith.constant 0 : index
      %c0_11 = arith.constant 0 : index
      %13 = vector.load %arg7[%c0_10, %c0_11] : memref<256x128xf32, #tpu.memory_space<vmem>>, vector<256x128xf32>
      tpu.vector_store %arg7[%c0_10, %c0_11], %12 {strides = array<i32>} : memref<256x128xf32, #tpu.memory_space<vmem>>, vector<256x128xf32>,
    } else {
    }
    %c0 = arith.constant 0 : index
    %c0_1 = arith.constant 0 : index
    %3 = vector.load %arg7[%c0, %c0_1] : memref<256x128xf32, #tpu.memory_space<vmem>>, vector<256x128xf32>
    %c0_2 = arith.constant 0 : index
    %c0_3 = arith.constant 0 : index
    %4 = vector.load %arg2[%c0_2, %c0_3] : memref<256x256xbf16, #tpu.memory_space<vmem>>, vector<256x256xbf16>
    %c0_4 = arith.constant 0 : index
    %c0_5 = arith.constant 0 : index
    %5 = vector.load %arg3[%c0_4, %c0_5] : memref<256x128xbf16, #tpu.memory_space<vmem>>, vector<256x128xbf16>
    %cst = arith.constant dense<0.000000e+00> : vector<256x128xf32>
    %6 = tpu.matmul %4, %5, %cst {dimension_numbers = #tpu.dot_dimension_numbers<[1], [0], [0], [1], [0, 0, 1, 1], [], []>} : vector<256x256xbf16>, vector<256x128xbf16>, vector<256x128xf32> -> vector<256x128xf32>
    %7 = arith.addf %3, %6 : vector<256x128xf32>
    %c0_6 = arith.constant 0 : index
    %c0_7 = arith.constant 0 : index
    %8 = vector.load %arg7[%c0_6, %c0_7] : memref<256x128xf32, #tpu.memory_space<vmem>>, vector<256x128xf32>
    tpu.vector_store %arg7[%c0_6, %c0_7], %7 {strides = array<i32>} : memref<256x128xf32, #tpu.memory_space<vmem>>, vector<256x128xf32>,
    %c1_i32 = arith.constant 1 : i32
    %9 = arith.cmpi eq, %arg1, %c1_i32 : i32
    %10 = arith.extui %9 : i1 to i32
    %c0_i32_8 = arith.constant 0 : i32
    %11 = arith.cmpi ne, %10, %c0_i32_8 : i32
    scf.if %11 {
      %c0_9 = arith.constant 0 : index
      %c0_10 = arith.constant 0 : index
      %12 = vector.load %arg7[%c0_9, %c0_10] : memref<256x128xf32, #tpu.memory_space<vmem>>, vector<256x128xf32>
      %c0_11 = arith.constant 0 : index
      %c0_12 = arith.constant 0 : index
      %13 = vector.load %arg4[%c0_11, %c0_12] : memref<256x128xbf16, #tpu.memory_space<vmem>>, vector<256x128xbf16>
      %14 = arith.extf %13 : vector<256x128xbf16> to vector<256x128xf32>
      %cst_13 = arith.constant 0.899999976 : f32
      %15 = vector.broadcast %cst_13 : f32 to vector<256x128xf32>
      %16 = arith.mulf %15, %12 : vector<256x128xf32>
      %cst_14 = arith.constant 1.000000e-01 : f32
      %17 = vector.broadcast %cst_14 : f32 to vector<256x128xf32>
      %18 = arith.mulf %17, %14 : vector<256x128xf32>
      %19 = arith.addf %16, %18 : vector<256x128xf32>
      %20 = arith.truncf %19 : vector<256x128xf32> to vector<256x128xbf16>
      %c0_15 = arith.constant 0 : index
      %c0_16 = arith.constant 0 : index
      %21 = vector.load %arg5[%c0_15, %c0_16] : memref<128x128xbf16, #tpu.memory_space<vmem>>, vector<128x128xbf16>
      %cst_17 = arith.constant dense<0.000000e+00> : vector<256x128xf32>
      %22 = tpu.matmul %20, %21, %cst_17 {dimension_numbers = #tpu.dot_dimension_numbers<[1], [0], [0], [1], [0, 0, 1, 1], [], []>} : vector<256x128xbf16>, vector<128x128xbf16>, vector<256x128xf32> -> vector<256x128xf32>
      %cst_18 = arith.constant 0.223143548 : f32
      %23 = vector.broadcast %cst_18 : f32 to vector<256x128xf32>
      %24 = arith.mulf %23, %22 : vector<256x128xf32>
      %cst_19 = arith.constant 0.776856422 : f32
      %25 = vector.broadcast %cst_19 : f32 to vector<256x128xf32>
      %26 = arith.mulf %25, %19 : vector<256x128xf32>
      %27 = arith.addf %24, %26 : vector<256x128xf32>
      %c0_20 = arith.constant 0 : index
      %c0_21 = arith.constant 0 : index
      %28 = vector.load %arg6[%c0_20, %c0_21] : memref<256x128xf32, #tpu.memory_space<vmem>>, vector<256x128xf32>
      tpu.vector_store %arg6[%c0_20, %c0_21], %27 {strides = array<i32>} : memref<256x128xf32, #tpu.memory_space<vmem>>, vector<256x128xf32>,
    } else {
    }
    return
  }
  func.func @transform_0(%arg0: i32, %arg1: i32) -> (i32, i32) {
    %c0_i32 = arith.constant 0 : i32
    return %arg0, %arg1 : i32, i32
  }
  func.func @transform_1(%arg0: i32, %arg1: i32) -> (i32, i32) {
    %c0_i32 = arith.constant 0 : i32
    %c0_i32_0 = arith.constant 0 : i32
    return %arg1, %c0_i32 : i32, i32
  }
  func.func @transform_2(%arg0: i32, %arg1: i32) -> (i32, i32) {
    %c0_i32 = arith.constant 0 : i32
    %c0_i32_0 = arith.constant 0 : i32
    return %arg0, %c0_i32 : i32, i32
  }
  func.func @transform_3(%arg0: i32, %arg1: i32) -> (i32, i32) {
    %c0_i32 = arith.constant 0 : i32
    %c0_i32_0 = arith.constant 0 : i32
    %c0_i32_1 = arith.constant 0 : i32
    return %c0_i32, %c0_i32_0 : i32, i32
  }
  func.func @transform_4(%arg0: i32, %arg1: i32) -> (i32, i32) {
    %c0_i32 = arith.constant 0 : i32
    %c0_i32_0 = arith.constant 0 : i32
    return %arg0, %c0_i32 : i32, i32
  }
}

</mosaic_0001>

<llo_original>
// kernel: tpu_custom_call.1
$region0: #{tpu_custom_call.1}
  #allocation0 [shape = 'u32[]', space=smem, size = 0x4, offset = 0x4, fixed_abs, tag = 'smem constant byte address 0x4 - core index']
  #allocation1 [shape = 'u32[144,128]{1,0:T(1,128)}', space=vmem, size = 0x12000, scoped, tag = 'internal scratch']
  #allocation2 [shape = 'f32[256,128]{1,0:T(8,128)}', space=vmem, size = 0x20000, scoped, tag = 'scratch operand']
  %s0 = inlined_call_operand.hbm [shape: bf16[512,512], index: 0, kind: input, shape index: {}]
  %s1 = inlined_call_operand.hbm [shape: bf16[512,128], index: 1, kind: input, shape index: {}]
  %s2 = inlined_call_operand.hbm [shape: bf16[512,128], index: 2, kind: input, shape index: {}]
  %s3 = inlined_call_operand.hbm [shape: bf16[128,128], index: 3, kind: input, shape index: {}]
  %s4 = inlined_call_operand.hbm [shape: f32[512,128], index: 4, kind: output, shape index: {}]
  %s5 = sld [smem:[#allocation0]]
  $region73: #{tpu_custom_call.1} parent=0
    _
  %s7 = ssub.s32 1, %s5
  %s8 = scalar_select 0, %s7, %s5
  $region1: #{tpu_custom_call.1} parent=0
    #allocation3 [shape = 'u8[262144]{0}', space=vmem, size = 0x40000, scoped, tag = 'input window, operand 0']
    #allocation4 [shape = 's32[2]{0}', space=sflag, size = 0x8, scoped, tag = 'scoped memory for tpu_custom_call.1']
    #allocation5 [shape = 's32[2]{0}', space=sflag, size = 0x8, scoped, tag = 'scoped memory for tpu_custom_call.1']
    #allocation6 [shape = 'u8[131072]{0}', space=vmem, size = 0x20000, scoped, tag = 'input window, operand 1']
    #allocation7 [shape = 's32[2]{0}', space=sflag, size = 0x8, scoped, tag = 'scoped memory for tpu_custom_call.1']
    #allocation8 [shape = 'u8[131072]{0}', space=vmem, size = 0x20000, scoped, tag = 'input window, operand 2']
    #allocation9 [shape = 'u8[32768]{0}', space=vmem, size = 0x8000, scoped, tag = 'input window, operand 3, single buffered']
    #allocation10 [shape = 's32[1]{0}', space=sflag, size = 0x4, scoped, tag = 'scoped memory for tpu_custom_call.1']
    #allocation11 [shape = 'u8[262144]{0}', space=vmem, size = 0x40000, scoped, tag = 'output window, operand 0']
    %9 = vsyncpa [#allocation4], 0
    %s10 = scalar_lea.sflag [#allocation4], 1
    %11 = vsyncpa %s10, 0
    %12 = vsyncpa [#allocation7], 0
    %s13 = scalar_lea.sflag [#allocation7], 1
    %14 = vsyncpa %s13, 0
    %15 = vsyncpa [#allocation10], 0
    %16 = vsyncpa [#allocation5], 0
    %s17 = scalar_lea.sflag [#allocation5], 1
    %18 = vsyncpa %s17, 0
    loop: start=0, step=1, limit=6
    $region2: #{tpu_custom_call.1} parent=1 // loop_pre_header
      _
    $region3: #{tpu_custom_call.1} parent=1 // loop_header
      %s20 = sphi 0, %s24
      %p21 = scmp.ge.s32.totalorder %s20, 6
      %s27 = sphi 0, %s39
      %s28 = sphi 0, %s35
      %s29 = sphi 0, %s27
      %s30 = sphi 0, %s28
      %s31 = sphi 0, %s29
      %s32 = sphi 0, %s30
      %s44 = sphi 0, %s46
      %s47 = sphi 0, %s44
      %s48 = sphi 0, %s47
      %s64 = sphi 0, %s48
      %s70 = sphi 0, %s72
      %s73 = sphi 0, %s70
      %s74 = sphi 0, %s73
      %s90 = sphi 0, %s74
      %s96 = sphi 0, %s98
      %s99 = sphi 0, %s96
      %s100 = sphi 0, %s99
      %s116 = sphi 0, %s100
      %s120 = sphi 0, %s120
      %s122 = sphi 0, %s120
      %s123 = sphi 0, %s122
      %s137 = sphi 0, %s123
      %s143 = sphi 0, %s145
      %s146 = sphi 0, %s143
      %s147 = sphi 0, %s146
      %s163 = sphi 0, %s147
    $region4: #{tpu_custom_call.1} parent=1 // loop_header_branch
      %23 = sbr.rel (%p21) target = $region8
    $region5: #{tpu_custom_call.1} parent=1 // loop_body
      %s25 = ssub.s32 %s20, 1
      %s26 = ssub.s32 %s20, 2
      %s33 = sadd.s32 1, %s28
      %p34 = scmp.ge.s32.totalorder %s33, 2
      %s35 = scalar_select %p34, 0, %s33
      %s36 = sadd.s32 1, %s27
      %s37 = scalar_select %p34, %s36, %s27
      %p38 = scmp.ge.s32.totalorder %s37, 2
      %s39 = scalar_select %p38, 0, %s37
      %s40 = ssub.s32 %s27, %s39
      %s41 = ssub.s32 %s28, %s35
      %s42 = sor.u32 %s40, %s41
      %p43 = scmp.eq.s32.totalorder %s42, 0
      %s45 = sadd.s32 %s44, 1
      %s46 = scalar_select %p43, %s44, %s45
      %p49 = pneg %p43
      %p50 = scmp.eq.s32.totalorder %s20, 3
      %p51 = por %p49, %p50
      %p52 = scmp.ne.s32.totalorder %s44, %s47
      %p53 = scmp.eq.s32.totalorder %s20, 0
      %p54 = por %p52, %p53
      %p55 = scmp.ne.s32.totalorder %s44, %s47
      %p56 = scmp.eq.s32.totalorder %s25, 3
      %p57 = por %p55, %p56
      %p58 = scmp.ne.s32.totalorder %s47, %s48
      %p59 = scmp.eq.s32.totalorder %s25, 0
      %p60 = por %p58, %p59
      %p61 = scmp.ne.s32.totalorder %s47, %s48
      %p62 = scmp.eq.s32.totalorder %s26, 3
      %p63 = por %p61, %p62
      %p65 = scmp.ne.s32.totalorder %s48, %s64
      %p66 = scmp.eq.s32.totalorder %s26, 0
      %p67 = por %p65, %p66
      %s68 = ssub.s32 %s28, %s35
      %p69 = scmp.eq.s32.totalorder %s68, 0
      %s71 = sadd.s32 %s70, 1
      %s72 = scalar_select %p69, %s70, %s71
      %p75 = pneg %p69
      %p76 = scmp.eq.s32.totalorder %s20, 3
      %p77 = por %p75, %p76
      %p78 = scmp.ne.s32.totalorder %s70, %s73
      %p79 = scmp.eq.s32.totalorder %s20, 0
      %p80 = por %p78, %p79
      %p81 = scmp.ne.s32.totalorder %s70, %s73
      %p82 = scmp.eq.s32.totalorder %s25, 3
      %p83 = por %p81, %p82
      %p84 = scmp.ne.s32.totalorder %s73, %s74
      %p85 = scmp.eq.s32.totalorder %s25, 0
      %p86 = por %p84, %p85
      %p87 = scmp.ne.s32.totalorder %s73, %s74
      %p88 = scmp.eq.s32.totalorder %s26, 3
      %p89 = por %p87, %p88
      %p91 = scmp.ne.s32.totalorder %s74, %s90
      %p92 = scmp.eq.s32.totalorder %s26, 0
      %p93 = por %p91, %p92
      %s94 = ssub.s32 %s27, %s39
      %p95 = scmp.eq.s32.totalorder %s94, 0
      %s97 = sadd.s32 %s96, 1
      %s98 = scalar_select %p95, %s96, %s97
      %p101 = pneg %p95
      %p102 = scmp.eq.s32.totalorder %s20, 3
      %p103 = por %p101, %p102
      %p104 = scmp.ne.s32.totalorder %s96, %s99
      %p105 = scmp.eq.s32.totalorder %s20, 0
      %p106 = por %p104, %p105
      %p107 = scmp.ne.s32.totalorder %s96, %s99
      %p108 = scmp.eq.s32.totalorder %s25, 3
      %p109 = por %p107, %p108
      %p110 = scmp.ne.s32.totalorder %s99, %s100
      %p111 = scmp.eq.s32.totalorder %s25, 0
      %p112 = por %p110, %p111
      %p113 = scmp.ne.s32.totalorder %s99, %s100
      %p114 = scmp.eq.s32.totalorder %s26, 3
      %p115 = por %p113, %p114
      %p117 = scmp.ne.s32.totalorder %s100, %s116
      %p118 = scmp.eq.s32.totalorder %s26, 0
      %p119 = por %p117, %p118
      %s121 = sadd.s32 %s120, 1
      %p124 = scmp.eq.s32.totalorder %s20, 3
      %p125 = scmp.ne.s32.totalorder %s120, %s122
      %p126 = scmp.eq.s32.totalorder %s20, 0
      %p127 = por %p125, %p126
      %p128 = scmp.ne.s32.totalorder %s120, %s122
      %p129 = scmp.eq.s32.totalorder %s25, 3
      %p130 = por %p128, %p129
      %p131 = scmp.ne.s32.totalorder %s122, %s123
      %p132 = scmp.eq.s32.totalorder %s25, 0
      %p133 = por %p131, %p132
      %p134 = scmp.ne.s32.totalorder %s122, %s123
      %p135 = scmp.eq.s32.totalorder %s26, 3
      %p136 = por %p134, %p135
      %p138 = scmp.ne.s32.totalorder %s123, %s137
      %p139 = scmp.eq.s32.totalorder %s26, 0
      %p140 = por %p138, %p139
      %s141 = ssub.s32 %s27, %s39
      %p142 = scmp.eq.s32.totalorder %s141, 0
      %s144 = sadd.s32 %s143, 1
      %s145 = scalar_select %p142, %s143, %s144
      %p148 = pneg %p142
      %p149 = scmp.eq.s32.totalorder %s20, 3
      %p150 = por %p148, %p149
      %p151 = scmp.ne.s32.totalorder %s143, %s146
      %p152 = scmp.eq.s32.totalorder %s20, 0
      %p153 = por %p151, %p152
      %p154 = scmp.ne.s32.totalorder %s143, %s146
      %p155 = scmp.eq.s32.totalorder %s25, 3
      %p156 = por %p154, %p155
      %p157 = scmp.ne.s32.totalorder %s146, %s147
      %p158 = scmp.eq.s32.totalorder %s25, 0
      %p159 = por %p157, %p158
      %p160 = scmp.ne.s32.totalorder %s146, %s147
      %p161 = scmp.eq.s32.totalorder %s26, 3
      %p162 = por %p160, %p161
      %p164 = scmp.ne.s32.totalorder %s147, %s163
      %p165 = scmp.eq.s32.totalorder %s26, 0
      %p166 = por %p164, %p165
      %p167 = scmp.le.s32.totalorder 1, %s20
      %p168 = scmp.lt.s32.totalorder %s20, 5
      %p169 = pnand %p167, %p168
      %p170 = pneg %p169
      // Predicated region
      $region9: #{tpu_custom_call.1} parent=5 // pred_check
        _
      $region10: #{tpu_custom_call.1} parent=5 // pred_check_branch
        %172 = sbr.rel (%p169) target = $region12
      $region11: #{tpu_custom_call.1} parent=5 // pred_region
        %s173 = ssub.s32 %s20, 1
        // Predicated region
        $region13: #{tpu_custom_call.1} parent=11 // pred_check
          %p174 = pneg %p133
        $region14: #{tpu_custom_call.1} parent=11 // pred_check_branch
          %176 = sbr.rel (%p174) target = $region16
        $region15: #{tpu_custom_call.1} parent=11 // pred_region
          %s178 = ssub.s32 1024, 1024
          %179 = vsyncadd [#allocation10], %s178
          %s180 = sshll.u32 [#allocation9], 4
          %s181 = int_to_ptr.vmem [resolvable:$true] %s180
          %186 = dma.hbm_to_vmem [thread:$0]  %s3, 1024, %s181, [#allocation10], 64, 64, 4
        $region16: #{tpu_custom_call.1} parent=11 // pred_fallthru
          _
      $region12: #{tpu_custom_call.1} parent=5 // pred_fallthru
        _
      %p187 = scmp.lt.s32.totalorder %s20, 4
      // Predicated region
      $region17: #{tpu_custom_call.1} parent=5 // pred_check
        %p188 = pneg %p187
      $region18: #{tpu_custom_call.1} parent=5 // pred_check_branch
        %190 = sbr.rel (%p188) target = $region20
      $region19: #{tpu_custom_call.1} parent=5 // pred_region
        // Predicated region
        $region21: #{tpu_custom_call.1} parent=19 // pred_check
          %p191 = pneg %p54
        $region22: #{tpu_custom_call.1} parent=19 // pred_check_branch
          %193 = sbr.rel (%p191) target = $region24
        $region23: #{tpu_custom_call.1} parent=19 // pred_region
          %s194 = sand.u32 %s44, 1
          %s195 = scalar_lea.sflag [#allocation4], %s194
          %s196 = sand.u32 %s44, 1
          %s197 = smul.addr %s196, 256
          %s198 = scalar_lea.vmem [#allocation3], %s197
          %s199 = smul.u32 32, %s27
          %s200 = smul.u32 2, %s28
          %s202 = ssub.s32 4096, 4096
          %203 = vsyncadd %s195, %s202
          %s204 = smul.addr %s199, 4
          %s205 = sadd.s32 %s200, %s204
          %s206 = smul.addr %s205, 64
          %s207 = scalar_lea.hbm %s0, %s206
          %s208 = sshll.u32 %s198, 4
          %s209 = int_to_ptr.vmem [resolvable:$true] %s208
          %214 = dma.hbm_to_vmem [thread:$0]  %s207, 4096, %s209, %s195, 256, 128, 8
        $region24: #{tpu_custom_call.1} parent=19 // pred_fallthru
          _
        // Predicated region
        $region25: #{tpu_custom_call.1} parent=19 // pred_check
          %p215 = pneg %p80
        $region26: #{tpu_custom_call.1} parent=19 // pred_check_branch
          %217 = sbr.rel (%p215) target = $region28
        $region27: #{tpu_custom_call.1} parent=19 // pred_region
          %s218 = sand.u32 %s20, 1
          %s219 = scalar_lea.sflag [#allocation7], %s218
          %s220 = sand.u32 %s70, 1
          %s221 = smul.addr %s220, 128
          %s222 = scalar_lea.vmem [#allocation6], %s221
          %s223 = smul.u32 32, %s28
          %s225 = ssub.s32 2048, 2048
          %226 = vsyncadd %s219, %s225
          %s227 = smul.addr %s223, 64
          %s228 = scalar_lea.hbm %s1, %s227
          %s229 = sshll.u32 %s222, 4
          %s230 = int_to_ptr.vmem [resolvable:$true] %s229
          %235 = dma.hbm_to_vmem [thread:$0]  %s228, 2048, %s230, %s219, 64, 64, 4
        $region28: #{tpu_custom_call.1} parent=19 // pred_fallthru
          _
        // Predicated region
        $region29: #{tpu_custom_call.1} parent=19 // pred_check
          %p236 = pneg %p106
        $region30: #{tpu_custom_call.1} parent=19 // pred_check_branch
          %238 = sbr.rel (%p236) target = $region32
        $region31: #{tpu_custom_call.1} parent=19 // pred_region
          %s239 = sand.u32 %s20, 1
          %s240 = scalar_lea.sflag [#allocation7], %s239
          %s241 = sand.u32 %s96, 1
          %s242 = smul.addr %s241, 128
          %s243 = scalar_lea.vmem [#allocation8], %s242
          %s244 = smul.u32 32, %s27
          %s246 = ssub.s32 2048, 2048
          %247 = vsyncadd %s240, %s246
          %s248 = smul.addr %s244, 64
          %s249 = scalar_lea.hbm %s2, %s248
          %s250 = sshll.u32 %s243, 4
          %s251 = int_to_ptr.vmem [resolvable:$true] %s250
          %256 = dma.hbm_to_vmem [thread:$0]  %s249, 2048, %s251, %s240, 64, 64, 4
        $region32: #{tpu_custom_call.1} parent=19 // pred_fallthru
          _
      $region20: #{tpu_custom_call.1} parent=5 // pred_fallthru
        _
      %p257 = scmp.le.s32.totalorder 1, %s20
      %p258 = scmp.lt.s32.totalorder %s20, 5
      %p259 = pnand %p257, %p258
      %p260 = pneg %p259
      // Predicated region
      $region33: #{tpu_custom_call.1} parent=5 // pred_check
        _
      $region34: #{tpu_custom_call.1} parent=5 // pred_check_branch
        %262 = sbr.rel (%p259) target = $region36
      $region35: #{tpu_custom_call.1} parent=5 // pred_region
        %s263 = ssub.s32 %s20, 1
        %s264 = sand.u32 %s47, 1
        %s265 = scalar_lea.sflag [#allocation4], %s264
        %s266 = sand.u32 %s47, 1
        %s267 = smul.addr %s266, 256
        %s268 = scalar_lea.vmem [#allocation3], %s267
        // Predicated region
        $region37: #{tpu_custom_call.1} parent=35 // pred_check
          %p269 = pneg %p60
        $region38: #{tpu_custom_call.1} parent=35 // pred_check_branch
          %271 = sbr.rel (%p269) target = $region40
        $region39: #{tpu_custom_call.1} parent=35 // pred_region
          %272 = dma.done %s265, 4096
        $region40: #{tpu_custom_call.1} parent=35 // pred_fallthru
          _
        %s273 = sand.u32 %s25, 1
        %s274 = scalar_lea.sflag [#allocation7], %s273
        %s275 = sand.u32 %s73, 1
        %s276 = smul.addr %s275, 128
        %s277 = scalar_lea.vmem [#allocation6], %s276
        // Predicated region
        $region41: #{tpu_custom_call.1} parent=35 // pred_check
          %p278 = pneg %p86
        $region42: #{tpu_custom_call.1} parent=35 // pred_check_branch
          %280 = sbr.rel (%p278) target = $region44
        $region43: #{tpu_custom_call.1} parent=35 // pred_region
          %281 = dma.done %s274, 2048
        $region44: #{tpu_custom_call.1} parent=35 // pred_fallthru
          _
        %s282 = sand.u32 %s25, 1
        %s283 = scalar_lea.sflag [#allocation7], %s282
        %s284 = sand.u32 %s99, 1
        %s285 = smul.addr %s284, 128
        %s286 = scalar_lea.vmem [#allocation8], %s285
        // Predicated region
        $region45: #{tpu_custom_call.1} parent=35 // pred_check
          %p287 = pneg %p112
        $region46: #{tpu_custom_call.1} parent=35 // pred_check_branch
          %289 = sbr.rel (%p287) target = $region48
        $region47: #{tpu_custom_call.1} parent=35 // pred_region
          %290 = dma.done %s283, 2048
        $region48: #{tpu_custom_call.1} parent=35 // pred_fallthru
          _
        // Predicated region
        $region49: #{tpu_custom_call.1} parent=35 // pred_check
          %p291 = pneg %p133
        $region50: #{tpu_custom_call.1} parent=35 // pred_check_branch
          %293 = sbr.rel (%p291) target = $region52
        $region51: #{tpu_custom_call.1} parent=35 // pred_region
          %294 = dma.done [#allocation10], 1024
        $region52: #{tpu_custom_call.1} parent=35 // pred_fallthru
          _
        %s295 = sand.u32 %s47, 1
        %s296 = scalar_lea.sflag [#allocation4], %s295
        %s297 = sand.u32 %s47, 1
        %s298 = smul.addr %s297, 256
        %s299 = scalar_lea.vmem [#allocation3], %s298
        %p300 = pneg %p60
        %p301 = pneg %p57
        %s302 = sand.u32 %s25, 1
        %s303 = scalar_lea.sflag [#allocation7], %s302
        %s304 = sand.u32 %s73, 1
        %s305 = smul.addr %s304, 128
        %s306 = scalar_lea.vmem [#allocation6], %s305
        %p307 = pneg %p86
        %p308 = pneg %p83
        %s309 = sand.u32 %s25, 1
        %s310 = scalar_lea.sflag [#allocation7], %s309
        %s311 = sand.u32 %s99, 1
        %s312 = smul.addr %s311, 128
        %s313 = scalar_lea.vmem [#allocation8], %s312
        %p314 = pneg %p112
        %p315 = pneg %p109
        %p316 = pneg %p133
        %p317 = pneg %p130
        %p318 = pneg %p159
        %p319 = pneg %p156
        %s320 = sand.u32 %s146, 1
        %s321 = scalar_lea.sflag [#allocation5], %s320
        %s322 = sand.u32 %s146, 1
        %s323 = smul.addr %s322, 256
        %s324 = scalar_lea.vmem [#allocation11], %s323
        %s325 = smul.u32 32, %s29
        %s326 = smul.u32 2, %s30
        %s327 = smul.u32 32, %s30
        %s328 = smul.u32 32, %s29
        %s329 = smul.u32 32, %s29
        %p331 = scmp.eq.s32.totalorder %s30, 0
        // Predicated region
        $region53: #{tpu_custom_call.1} parent=35 // pred_check
          %p332 = pneg %p331
        $region54: #{tpu_custom_call.1} parent=35 // pred_check_branch
          %334 = sbr.rel (%p332) target = $region56
        $region55: #{tpu_custom_call.1} parent=35 // pred_region
          %335 = vst [vmem:[#allocation2] sm:$0xff] 0.0
          %336 = vst [vmem:[#allocation2 + $0x8] sm:$0xff] 0.0
          %337 = vst [vmem:[#allocation2 + $0x10] sm:$0xff] 0.0
          %338 = vst [vmem:[#allocation2 + $0x18] sm:$0xff] 0.0
          %339 = vst [vmem:[#allocation2 + $0x20] sm:$0xff] 0.0
          %340 = vst [vmem:[#allocation2 + $0x28] sm:$0xff] 0.0
          %341 = vst [vmem:[#allocation2 + $0x30] sm:$0xff] 0.0
          %342 = vst [vmem:[#allocation2 + $0x38] sm:$0xff] 0.0
          %343 = vst [vmem:[#allocation2 + $0x40] sm:$0xff] 0.0
          %344 = vst [vmem:[#allocation2 + $0x48] sm:$0xff] 0.0
          %345 = vst [vmem:[#allocation2 + $0x50] sm:$0xff] 0.0
          %346 = vst [vmem:[#allocation2 + $0x58] sm:$0xff] 0.0
          %347 = vst [vmem:[#allocation2 + $0x60] sm:$0xff] 0.0
          %348 = vst [vmem:[#allocation2 + $0x68] sm:$0xff] 0.0
          %349 = vst [vmem:[#allocation2 + $0x70] sm:$0xff] 0.0
          %350 = vst [vmem:[#allocation2 + $0x78] sm:$0xff] 0.0
          %351 = vst [vmem:[#allocation2 + $0x80] sm:$0xff] 0.0
          %352 = vst [vmem:[#allocation2 + $0x88] sm:$0xff] 0.0
          %353 = vst [vmem:[#allocation2 + $0x90] sm:$0xff] 0.0
          %354 = vst [vmem:[#allocation2 + $0x98] sm:$0xff] 0.0
          %355 = vst [vmem:[#allocation2 + $0xa0] sm:$0xff] 0.0
          %356 = vst [vmem:[#allocation2 + $0xa8] sm:$0xff] 0.0
          %357 = vst [vmem:[#allocation2 + $0xb0] sm:$0xff] 0.0
          %358 = vst [vmem:[#allocation2 + $0xb8] sm:$0xff] 0.0
          %359 = vst [vmem:[#allocation2 + $0xc0] sm:$0xff] 0.0
          %360 = vst [vmem:[#allocation2 + $0xc8] sm:$0xff] 0.0
          %361 = vst [vmem:[#allocation2 + $0xd0] sm:$0xff] 0.0
          %362 = vst [vmem:[#allocation2 + $0xd8] sm:$0xff] 0.0
          %363 = vst [vmem:[#allocation2 + $0xe0] sm:$0xff] 0.0
          %364 = vst [vmem:[#allocation2 + $0xe8] sm:$0xff] 0.0
          %365 = vst [vmem:[#allocation2 + $0xf0] sm:$0xff] 0.0
          %366 = vst [vmem:[#allocation2 + $0xf8] sm:$0xff] 0.0
        $region56: #{tpu_custom_call.1} parent=35 // pred_fallthru
          _
        %v367 = vld [vmem:[#allocation2] sm:$0xff]
        %v368 = vld [vmem:[#allocation2 + $0x8] sm:$0xff]
        %v369 = vld [vmem:[#allocation2 + $0x10] sm:$0xff]
        %v370 = vld [vmem:[#allocation2 + $0x18] sm:$0xff]
        %v371 = vld [vmem:[#allocation2 + $0x20] sm:$0xff]
        %v372 = vld [vmem:[#allocation2 + $0x28] sm:$0xff]
        %v373 = vld [vmem:[#allocation2 + $0x30] sm:$0xff]
        %v374 = vld [vmem:[#allocation2 + $0x38] sm:$0xff]
        %v375 = vld [vmem:[#allocation2 + $0x40] sm:$0xff]
        %v376 = vld [vmem:[#allocation2 + $0x48] sm:$0xff]
        %v377 = vld [vmem:[#allocation2 + $0x50] sm:$0xff]
        %v378 = vld [vmem:[#allocation2 + $0x58] sm:$0xff]
        %v379 = vld [vmem:[#allocation2 + $0x60] sm:$0xff]
        %v380 = vld [vmem:[#allocation2 + $0x68] sm:$0xff]
        %v381 = vld [vmem:[#allocation2 + $0x70] sm:$0xff]
        %v382 = vld [vmem:[#allocation2 + $0x78] sm:$0xff]
        %v383 = vld [vmem:[#allocation2 + $0x80] sm:$0xff]
        %v384 = vld [vmem:[#allocation2 + $0x88] sm:$0xff]
        %v385 = vld [vmem:[#allocation2 + $0x90] sm:$0xff]
        %v386 = vld [vmem:[#allocation2 + $0x98] sm:$0xff]
        %v387 = vld [vmem:[#allocation2 + $0xa0] sm:$0xff]
        %v388 = vld [vmem:[#allocation2 + $0xa8] sm:$0xff]
        %v389 = vld [vmem:[#allocation2 + $0xb0] sm:$0xff]
        %v390 = vld [vmem:[#allocation2 + $0xb8] sm:$0xff]
        %v391 = vld [vmem:[#allocation2 + $0xc0] sm:$0xff]
        %v392 = vld [vmem:[#allocation2 + $0xc8] sm:$0xff]
        %v393 = vld [vmem:[#allocation2 + $0xd0] sm:$0xff]
        %v394 = vld [vmem:[#allocation2 + $0xd8] sm:$0xff]
        %v395 = vld [vmem:[#allocation2 + $0xe0] sm:$0xff]
        %v396 = vld [vmem:[#allocation2 + $0xe8] sm:$0xff]
        %v397 = vld [vmem:[#allocation2 + $0xf0] sm:$0xff]
        %v398 = vld [vmem:[#allocation2 + $0xf8] sm:$0xff]
        %v399 = vld [vmem:[%s268] sm:$0xff]
        %v400 = vld [vmem:[%s268 + $0x8] sm:$0xff]
        %v401 = vld [vmem:[%s268 + $0x10] sm:$0xff]
        %v402 = vld [vmem:[%s268 + $0x18] sm:$0xff]
        %v403 = vld [vmem:[%s268 + $0x20] sm:$0xff]
        %v404 = vld [vmem:[%s268 + $0x28] sm:$0xff]
        %v405 = vld [vmem:[%s268 + $0x30] sm:$0xff]
        %v406 = vld [vmem:[%s268 + $0x38] sm:$0xff]
        %v407 = vld [vmem:[%s268 + $0x40] sm:$0xff]
        %v408 = vld [vmem:[%s268 + $0x48] sm:$0xff]
        %v409 = vld [vmem:[%s268 + $0x50] sm:$0xff]
        %v410 = vld [vmem:[%s268 + $0x58] sm:$0xff]
        %v411 = vld [vmem:[%s268 + $0x60] sm:$0xff]
        %v412 = vld [vmem:[%s268 + $0x68] sm:$0xff]
        %v413 = vld [vmem:[%s268 + $0x70] sm:$0xff]
        %v414 = vld [vmem:[%s268 + $0x78] sm:$0xff]
        %v415 = vld [vmem:[%s268 + $0x80] sm:$0xff]
        %v416 = vld [vmem:[%s268 + $0x88] sm:$0xff]
        %v417 = vld [vmem:[%s268 + $0x90] sm:$0xff]
        %v418 = vld [vmem:[%s268 + $0x98] sm:$0xff]
        %v419 = vld [vmem:[%s268 + $0xa0] sm:$0xff]
        %v420 = vld [vmem:[%s268 + $0xa8] sm:$0xff]
        %v421 = vld [vmem:[%s268 + $0xb0] sm:$0xff]
        %v422 = vld [vmem:[%s268 + $0xb8] sm:$0xff]
        %v423 = vld [vmem:[%s268 + $0xc0] sm:$0xff]
        %v424 = vld [vmem:[%s268 + $0xc8] sm:$0xff]
        %v425 = vld [vmem:[%s268 + $0xd0] sm:$0xff]
        %v426 = vld [vmem:[%s268 + $0xd8] sm:$0xff]
        %v427 = vld [vmem:[%s268 + $0xe0] sm:$0xff]
        %v428 = vld [vmem:[%s268 + $0xe8] sm:$0xff]
        %v429 = vld [vmem:[%s268 + $0xf0] sm:$0xff]
        %v430 = vld [vmem:[%s268 + $0xf8] sm:$0xff]
        %v431 = vld [vmem:[%s277] sm:$0xf]
        %v432 = vld [vmem:[%s277 + $0x4] sm:$0xf]
        %v433 = vld [vmem:[%s277 + $0x8] sm:$0xf]
        %v434 = vld [vmem:[%s277 + $0xc] sm:$0xf]
        %v435 = vld [vmem:[%s277 + $0x10] sm:$0xf]
        %v436 = vld [vmem:[%s277 + $0x14] sm:$0xf]
        %v437 = vld [vmem:[%s277 + $0x18] sm:$0xf]
        %v438 = vld [vmem:[%s277 + $0x1c] sm:$0xf]
        %v439 = vld [vmem:[%s277 + $0x20] sm:$0xf]
        %v440 = vld [vmem:[%s277 + $0x24] sm:$0xf]
        %v441 = vld [vmem:[%s277 + $0x28] sm:$0xf]
        %v442 = vld [vmem:[%s277 + $0x2c] sm:$0xf]
        %v443 = vld [vmem:[%s277 + $0x30] sm:$0xf]
        %v444 = vld [vmem:[%s277 + $0x34] sm:$0xf]
        %v445 = vld [vmem:[%s277 + $0x38] sm:$0xf]
        %v446 = vld [vmem:[%s277 + $0x3c] sm:$0xf]
        %v447 = vld [vmem:[%s277 + $0x40] sm:$0xf]
        %v448 = vld [vmem:[%s277 + $0x44] sm:$0xf]
        %v449 = vld [vmem:[%s277 + $0x48] sm:$0xf]
        %v450 = vld [vmem:[%s277 + $0x4c] sm:$0xf]
        %v451 = vld [vmem:[%s277 + $0x50] sm:$0xf]
        %v452 = vld [vmem:[%s277 + $0x54] sm:$0xf]
        %v453 = vld [vmem:[%s277 + $0x58] sm:$0xf]
        %v454 = vld [vmem:[%s277 + $0x5c] sm:$0xf]
        %v455 = vld [vmem:[%s277 + $0x60] sm:$0xf]
        %v456 = vld [vmem:[%s277 + $0x64] sm:$0xf]
        %v457 = vld [vmem:[%s277 + $0x68] sm:$0xf]
        %v458 = vld [vmem:[%s277 + $0x6c] sm:$0xf]
        %v459 = vld [vmem:[%s277 + $0x70] sm:$0xf]
        %v460 = vld [vmem:[%s277 + $0x74] sm:$0xf]
        %v461 = vld [vmem:[%s277 + $0x78] sm:$0xf]
        %v462 = vld [vmem:[%s277 + $0x7c] sm:$0xf]
        %v495 = vunpack.c.l.b16 %v399
        %v496 = vunpack.c.h.b16 %v399
        %v497 = vunpack.c.l.b16 %v400
        %v498 = vunpack.c.h.b16 %v400
        %v499 = vunpack.c.l.b16 %v401
        %v500 = vunpack.c.h.b16 %v401
        %v501 = vunpack.c.l.b16 %v402
        %v502 = vunpack.c.h.b16 %v402
        %v503 = vunpack.c.l.b16 %v403
        %v504 = vunpack.c.h.b16 %v403
        %v505 = vunpack.c.l.b16 %v404
        %v506 = vunpack.c.h.b16 %v404
        %v507 = vunpack.c.l.b16 %v405
        %v508 = vunpack.c.h.b16 %v405
        %v509 = vunpack.c.l.b16 %v406
        %v510 = vunpack.c.h.b16 %v406
        %v511 = vunpack.c.l.b16 %v407
        %v512 = vunpack.c.h.b16 %v407
        %v513 = vunpack.c.l.b16 %v408
        %v514 = vunpack.c.h.b16 %v408
        %v515 = vunpack.c.l.b16 %v409
        %v516 = vunpack.c.h.b16 %v409
        %v517 = vunpack.c.l.b16 %v410
        %v518 = vunpack.c.h.b16 %v410
        %v519 = vunpack.c.l.b16 %v411
        %v520 = vunpack.c.h.b16 %v411
        %v521 = vunpack.c.l.b16 %v412
        %v522 = vunpack.c.h.b16 %v412
        %v523 = vunpack.c.l.b16 %v413
        %v524 = vunpack.c.h.b16 %v413
        %v525 = vunpack.c.l.b16 %v414
        %v526 = vunpack.c.h.b16 %v414
        %v527 = vunpack.c.l.b16 %v415
        %v528 = vunpack.c.h.b16 %v415
        %v529 = vunpack.c.l.b16 %v416
        %v530 = vunpack.c.h.b16 %v416
        %v531 = vunpack.c.l.b16 %v417
        %v532 = vunpack.c.h.b16 %v417
        %v533 = vunpack.c.l.b16 %v418
        %v534 = vunpack.c.h.b16 %v418
        %v535 = vunpack.c.l.b16 %v419
        %v536 = vunpack.c.h.b16 %v419
        %v537 = vunpack.c.l.b16 %v420
        %v538 = vunpack.c.h.b16 %v420
        %v539 = vunpack.c.l.b16 %v421
        %v540 = vunpack.c.h.b16 %v421
        %v541 = vunpack.c.l.b16 %v422
        %v542 = vunpack.c.h.b16 %v422
        %v543 = vunpack.c.l.b16 %v423
        %v544 = vunpack.c.h.b16 %v423
        %v545 = vunpack.c.l.b16 %v424
        %v546 = vunpack.c.h.b16 %v424
        %v547 = vunpack.c.l.b16 %v425
        %v548 = vunpack.c.h.b16 %v425
        %v549 = vunpack.c.l.b16 %v426
        %v550 = vunpack.c.h.b16 %v426
        %v551 = vunpack.c.l.b16 %v427
        %v552 = vunpack.c.h.b16 %v427
        %v553 = vunpack.c.l.b16 %v428
        %v554 = vunpack.c.h.b16 %v428
        %v555 = vunpack.c.l.b16 %v429
        %v556 = vunpack.c.h.b16 %v429
        %v557 = vunpack.c.l.b16 %v430
        %v558 = vunpack.c.h.b16 %v430
        %v559 = vpack.c.b16 %v497, %v495
        %v560 = vpack.c.b16 %v498, %v496
        %v561 = vpack.c.b16 %v501, %v499
        %v562 = vpack.c.b16 %v502, %v500
        %v563 = vpack.c.b16 %v505, %v503
        %v564 = vpack.c.b16 %v506, %v504
        %v565 = vpack.c.b16 %v509, %v507
        %v566 = vpack.c.b16 %v510, %v508
        %v567 = vpack.c.b16 %v513, %v511
        %v568 = vpack.c.b16 %v514, %v512
        %v569 = vpack.c.b16 %v517, %v515
        %v570 = vpack.c.b16 %v518, %v516
        %v571 = vpack.c.b16 %v521, %v519
        %v572 = vpack.c.b16 %v522, %v520
        %v573 = vpack.c.b16 %v525, %v523
        %v574 = vpack.c.b16 %v526, %v524
        %v575 = vpack.c.b16 %v529, %v527
        %v576 = vpack.c.b16 %v530, %v528
        %v577 = vpack.c.b16 %v533, %v531
        %v578 = vpack.c.b16 %v534, %v532
        %v579 = vpack.c.b16 %v537, %v535
        %v580 = vpack.c.b16 %v538, %v536
        %v581 = vpack.c.b16 %v541, %v539
        %v582 = vpack.c.b16 %v542, %v540
        %v583 = vpack.c.b16 %v545, %v543
        %v584 = vpack.c.b16 %v546, %v544
        %v585 = vpack.c.b16 %v549, %v547
        %v586 = vpack.c.b16 %v550, %v548
        %v587 = vpack.c.b16 %v553, %v551
        %v588 = vpack.c.b16 %v554, %v552
        %v589 = vpack.c.b16 %v557, %v555
        %v590 = vpack.c.b16 %v558, %v556
        %v655 = vunpack.c.l.b16 %v431
        %v656 = vunpack.c.l.b16 %v432
        %v657 = vunpack.c.l.b16 %v433
        %v658 = vunpack.c.l.b16 %v434
        %v659 = vunpack.c.l.b16 %v435
        %v660 = vunpack.c.l.b16 %v436
        %v661 = vunpack.c.l.b16 %v437
        %v662 = vunpack.c.l.b16 %v438
        %v663 = vunpack.c.l.b16 %v439
        %v664 = vunpack.c.l.b16 %v440
        %v665 = vunpack.c.l.b16 %v441
        %v666 = vunpack.c.l.b16 %v442
        %v667 = vunpack.c.l.b16 %v443
        %v668 = vunpack.c.l.b16 %v444
        %v669 = vunpack.c.l.b16 %v445
        %v670 = vunpack.c.l.b16 %v446
        %v671 = vunpack.c.l.b16 %v447
        %v672 = vunpack.c.l.b16 %v448
        %v673 = vunpack.c.l.b16 %v449
        %v674 = vunpack.c.l.b16 %v450
        %v675 = vunpack.c.l.b16 %v451
        %v676 = vunpack.c.l.b16 %v452
        %v677 = vunpack.c.l.b16 %v453
        %v678 = vunpack.c.l.b16 %v454
        %v679 = vunpack.c.l.b16 %v455
        %v680 = vunpack.c.l.b16 %v456
        %v681 = vunpack.c.l.b16 %v457
        %v682 = vunpack.c.l.b16 %v458
        %v683 = vunpack.c.l.b16 %v459
        %v684 = vunpack.c.l.b16 %v460
        %v685 = vunpack.c.l.b16 %v461
        %v686 = vunpack.c.l.b16 %v462
        %v687 = vpack.c.b16 %v656, %v655
        %v688 = vpack.c.b16 %v658, %v657
        %v689 = vpack.c.b16 %v660, %v659
        %v690 = vpack.c.b16 %v662, %v661
        %v691 = vpack.c.b16 %v664, %v663
        %v692 = vpack.c.b16 %v666, %v665
        %v693 = vpack.c.b16 %v668, %v667
        %v694 = vpack.c.b16 %v670, %v669
        %v695 = vpack.c.b16 %v672, %v671
        %v696 = vpack.c.b16 %v674, %v673
        %v697 = vpack.c.b16 %v676, %v675
        %v698 = vpack.c.b16 %v678, %v677
        %v699 = vpack.c.b16 %v680, %v679
        %v700 = vpack.c.b16 %v682, %v681
        %v701 = vpack.c.b16 %v684, %v683
        %v702 = vpack.c.b16 %v686, %v685
        %719 = vmatprep.subr.bf16.mxu0 0
        %720 = vmatpush1.bf16.msra.mxu0 %v687
        %721 = vmatprep.subr.bf16.mxu0 0
        %722 = vmatpush1.bf16.msra.mxu0 %v688
        %723 = vmatprep.subr.bf16.mxu0 0
        %724 = vmatpush1.bf16.msra.mxu0 %v689
        %725 = vmatprep.subr.bf16.mxu0 0
        %726 = vmatpush1.bf16.msra.mxu0 %v690
        %727 = vmatprep.subr.bf16.mxu0 0
        %728 = vmatpush1.bf16.msra.mxu0 %v691
        %729 = vmatprep.subr.bf16.mxu0 0
        %730 = vmatpush1.bf16.msra.mxu0 %v692
        %731 = vmatprep.subr.bf16.mxu0 0
        %732 = vmatpush1.bf16.msra.mxu0 %v693
        %733 = vmatprep.subr.bf16.mxu0 0
        %734 = vmatpush1.bf16.msra.mxu0 %v694
        %735 = vmatprep.subr.bf16.mxu0 0
        %736 = vmatpush1.bf16.msra.mxu0 %v695
        %737 = vmatprep.subr.bf16.mxu0 0
        %738 = vmatpush1.bf16.msra.mxu0 %v696
        %739 = vmatprep.subr.bf16.mxu0 0
        %740 = vmatpush1.bf16.msra.mxu0 %v697
        %741 = vmatprep.subr.bf16.mxu0 0
        %742 = vmatpush1.bf16.msra.mxu0 %v698
        %743 = vmatprep.subr.bf16.mxu0 0
        %744 = vmatpush1.bf16.msra.mxu0 %v699
        %745 = vmatprep.subr.bf16.mxu0 0
        %746 = vmatpush1.bf16.msra.mxu0 %v700
        %747 = vmatprep.subr.bf16.mxu0 0
        %748 = vmatpush1.bf16.msra.mxu0 %v701
        %749 = vmatprep.subr.bf16.mxu0 0
        %750 = vmatpush1.bf16.msra.mxu0 %v702
        %751 = vmatprep.mubr.bf16.mxu0 %v560
        %752 = vmatmul.mubr.bf16.gmra.mrb[0].mxu0 %v559
        %v753 = vpop.f32.mrb[0].mxu0
        %v754 = vadd.f32 0.0, %v753
        %v755 = vpop.f32.mrb[0].mxu0
        %v756 = vpop.f32.mrb[0].mxu0
        %v757 = vadd.f32 0.0, %v756
        %v758 = vpop.f32.mrb[0].mxu0
        %759 = vmatprep.mubr.bf16.mxu0 %v562
        %760 = vmatmul.mubr.bf16.gmra.mrb[0].mxu0 %v561
        %v761 = vpop.f32.mrb[0].mxu0
        %v762 = vadd.f32 0.0, %v761
        %v763 = vpop.f32.mrb[0].mxu0
        %v764 = vpop.f32.mrb[0].mxu0
        %v765 = vadd.f32 0.0, %v764
        %v766 = vpop.f32.mrb[0].mxu0
        %767 = vmatprep.mubr.bf16.mxu0 %v564
        %768 = vmatmul.mubr.bf16.gmra.mrb[0].mxu0 %v563
        %v769 = vpop.f32.mrb[0].mxu0
        %v770 = vadd.f32 0.0, %v769
        %v771 = vpop.f32.mrb[0].mxu0
        %v772 = vpop.f32.mrb[0].mxu0
        %v773 = vadd.f32 0.0, %v772
        %v774 = vpop.f32.mrb[0].mxu0
        %775 = vmatprep.mubr.bf16.mxu0 %v566
        %776 = vmatmul.mubr.bf16.gmra.mrb[0].mxu0 %v565
        %v777 = vpop.f32.mrb[0].mxu0
        %v778 = vadd.f32 0.0, %v777
        %v779 = vpop.f32.mrb[0].mxu0
        %v780 = vpop.f32.mrb[0].mxu0
        %v781 = vadd.f32 0.0, %v780
        %v782 = vpop.f32.mrb[0].mxu0
        %783 = vmatprep.mubr.bf16.mxu0 %v568
        %784 = vmatmul.mubr.bf16.gmra.mrb[0].mxu0 %v567
        %v785 = vpop.f32.mrb[0].mxu0
        %v786 = vadd.f32 0.0, %v785
        %v787 = vpop.f32.mrb[0].mxu0
        %v788 = vpop.f32.mrb[0].mxu0
        %v789 = vadd.f32 0.0, %v788
        %v790 = vpop.f32.mrb[0].mxu0
        %791 = vmatprep.mubr.bf16.mxu0 %v570
        %792 = vmatmul.mubr.bf16.gmra.mrb[0].mxu0 %v569
        %v793 = vpop.f32.mrb[0].mxu0
        %v794 = vadd.f32 0.0, %v793
        %v795 = vpop.f32.mrb[0].mxu0
        %v796 = vpop.f32.mrb[0].mxu0
        %v797 = vadd.f32 0.0, %v796
        %v798 = vpop.f32.mrb[0].mxu0
        %799 = vmatprep.mubr.bf16.mxu0 %v572
        %800 = vmatmul.mubr.bf16.gmra.mrb[0].mxu0 %v571
        %v801 = vpop.f32.mrb[0].mxu0
        %v802 = vadd.f32 0.0, %v801
        %v803 = vpop.f32.mrb[0].mxu0
        %v804 = vpop.f32.mrb[0].mxu0
        %v805 = vadd.f32 0.0, %v804
        %v806 = vpop.f32.mrb[0].mxu0
        %807 = vmatprep.mubr.bf16.mxu0 %v574
        %808 = vmatmul.mubr.bf16.gmra.mrb[0].mxu0 %v573
        %v809 = vpop.f32.mrb[0].mxu0
        %v810 = vadd.f32 0.0, %v809
        %v811 = vpop.f32.mrb[0].mxu0
        %v812 = vpop.f32.mrb[0].mxu0
        %v813 = vadd.f32 0.0, %v812
        %v814 = vpop.f32.mrb[0].mxu0
        %815 = vmatprep.mubr.bf16.mxu0 %v576
        %816 = vmatmul.mubr.bf16.gmra.mrb[0].mxu0 %v575
        %v817 = vpop.f32.mrb[0].mxu0
        %v818 = vadd.f32 0.0, %v817
        %v819 = vpop.f32.mrb[0].mxu0
        %v820 = vpop.f32.mrb[0].mxu0
        %v821 = vadd.f32 0.0, %v820
        %v822 = vpop.f32.mrb[0].mxu0
        %823 = vmatprep.mubr.bf16.mxu0 %v578
        %824 = vmatmul.mubr.bf16.gmra.mrb[0].mxu0 %v577
        %v825 = vpop.f32.mrb[0].mxu0
        %v826 = vadd.f32 0.0, %v825
        %v827 = vpop.f32.mrb[0].mxu0
        %v828 = vpop.f32.mrb[0].mxu0
        %v829 = vadd.f32 0.0, %v828
        %v830 = vpop.f32.mrb[0].mxu0
        %831 = vmatprep.mubr.bf16.mxu0 %v580
        %832 = vmatmul.mubr.bf16.gmra.mrb[0].mxu0 %v579
        %v833 = vpop.f32.mrb[0].mxu0
        %v834 = vadd.f32 0.0, %v833
        %v835 = vpop.f32.mrb[0].mxu0
        %v836 = vpop.f32.mrb[0].mxu0
        %v837 = vadd.f32 0.0, %v836
        %v838 = vpop.f32.mrb[0].mxu0
        %839 = vmatprep.mubr.bf16.mxu0 %v582
        %840 = vmatmul.mubr.bf16.gmra.mrb[0].mxu0 %v581
        %v841 = vpop.f32.mrb[0].mxu0
        %v842 = vadd.f32 0.0, %v841
        %v843 = vpop.f32.mrb[0].mxu0
        %v844 = vpop.f32.mrb[0].mxu0
        %v845 = vadd.f32 0.0, %v844
        %v846 = vpop.f32.mrb[0].mxu0
        %847 = vmatprep.mubr.bf16.mxu0 %v584
        %848 = vmatmul.mubr.bf16.gmra.mrb[0].mxu0 %v583
        %v849 = vpop.f32.mrb[0].mxu0
        %v850 = vadd.f32 0.0, %v849
        %v851 = vpop.f32.mrb[0].mxu0
        %v852 = vpop.f32.mrb[0].mxu0
        %v853 = vadd.f32 0.0, %v852
        %v854 = vpop.f32.mrb[0].mxu0
        %855 = vmatprep.mubr.bf16.mxu0 %v586
        %856 = vmatmul.mubr.bf16.gmra.mrb[0].mxu0 %v585
        %v857 = vpop.f32.mrb[0].mxu0
        %v858 = vadd.f32 0.0, %v857
        %v859 = vpop.f32.mrb[0].mxu0
        %v860 = vpop.f32.mrb[0].mxu0
        %v861 = vadd.f32 0.0, %v860
        %v862 = vpop.f32.mrb[0].mxu0
        %863 = vmatprep.mubr.bf16.mxu0 %v588
        %864 = vmatmul.mubr.bf16.gmra.mrb[0].mxu0 %v587
        %v865 = vpop.f32.mrb[0].mxu0
        %v866 = vadd.f32 0.0, %v865
        %v867 = vpop.f32.mrb[0].mxu0
        %v868 = vpop.f32.mrb[0].mxu0
        %v869 = vadd.f32 0.0, %v868
        %v870 = vpop.f32.mrb[0].mxu0
        %871 = vmatprep.mubr.bf16.mxu0 %v590
        %872 = vmatmul.mubr.bf16.gmra.mrb[0].mxu0 %v589
        %v873 = vpop.f32.mrb[0].mxu0
        %v874 = vadd.f32 0.0, %v873
        %v875 = vpop.f32.mrb[0].mxu0
        %v876 = vpop.f32.mrb[0].mxu0
        %v877 = vadd.f32 0.0, %v876
        %v878 = vpop.f32.mrb[0].mxu0
        %879 = vdwg.mxu0
        %v880 = vadd.f32 %v367, %v754
        %v881 = vadd.f32 %v368, %v757
        %v882 = vadd.f32 %v369, %v762
        %v883 = vadd.f32 %v370, %v765
        %v884 = vadd.f32 %v371, %v770
        %v885 = vadd.f32 %v372, %v773
        %v886 = vadd.f32 %v373, %v778
        %v887 = vadd.f32 %v374, %v781
        %v888 = vadd.f32 %v375, %v786
        %v889 = vadd.f32 %v376, %v789
        %v890 = vadd.f32 %v377, %v794
        %v891 = vadd.f32 %v378, %v797
        %v892 = vadd.f32 %v379, %v802
        %v893 = vadd.f32 %v380, %v805
        %v894 = vadd.f32 %v381, %v810
        %v895 = vadd.f32 %v382, %v813
        %v896 = vadd.f32 %v383, %v818
        %v897 = vadd.f32 %v384, %v821
        %v898 = vadd.f32 %v385, %v826
        %v899 = vadd.f32 %v386, %v829
        %v900 = vadd.f32 %v387, %v834
        %v901 = vadd.f32 %v388, %v837
        %v902 = vadd.f32 %v389, %v842
        %v903 = vadd.f32 %v390, %v845
        %v904 = vadd.f32 %v391, %v850
        %v905 = vadd.f32 %v392, %v853
        %v906 = vadd.f32 %v393, %v858
        %v907 = vadd.f32 %v394, %v861
        %v908 = vadd.f32 %v395, %v866
        %v909 = vadd.f32 %v396, %v869
        %v910 = vadd.f32 %v397, %v874
        %v911 = vadd.f32 %v398, %v877
        %912 = vst [vmem:[#allocation2] sm:$0xff] %v880
        %913 = vst [vmem:[#allocation2 + $0x8] sm:$0xff] %v881
        %914 = vst [vmem:[#allocation2 + $0x10] sm:$0xff] %v882
        %915 = vst [vmem:[#allocation2 + $0x18] sm:$0xff] %v883
        %916 = vst [vmem:[#allocation2 + $0x20] sm:$0xff] %v884
        %917 = vst [vmem:[#allocation2 + $0x28] sm:$0xff] %v885
        %918 = vst [vmem:[#allocation2 + $0x30] sm:$0xff] %v886
        %919 = vst [vmem:[#allocation2 + $0x38] sm:$0xff] %v887
        %920 = vst [vmem:[#allocation2 + $0x40] sm:$0xff] %v888
        %921 = vst [vmem:[#allocation2 + $0x48] sm:$0xff] %v889
        %922 = vst [vmem:[#allocation2 + $0x50] sm:$0xff] %v890
        %923 = vst [vmem:[#allocation2 + $0x58] sm:$0xff] %v891
        %924 = vst [vmem:[#allocation2 + $0x60] sm:$0xff] %v892
        %925 = vst [vmem:[#allocation2 + $0x68] sm:$0xff] %v893
        %926 = vst [vmem:[#allocation2 + $0x70] sm:$0xff] %v894
        %927 = vst [vmem:[#allocation2 + $0x78] sm:$0xff] %v895
        %928 = vst [vmem:[#allocation2 + $0x80] sm:$0xff] %v896
        %929 = vst [vmem:[#allocation2 + $0x88] sm:$0xff] %v897
        %930 = vst [vmem:[#allocation2 + $0x90] sm:$0xff] %v898
        %931 = vst [vmem:[#allocation2 + $0x98] sm:$0xff] %v899
        %932 = vst [vmem:[#allocation2 + $0xa0] sm:$0xff] %v900
        %933 = vst [vmem:[#allocation2 + $0xa8] sm:$0xff] %v901
        %934 = vst [vmem:[#allocation2 + $0xb0] sm:$0xff] %v902
        %935 = vst [vmem:[#allocation2 + $0xb8] sm:$0xff] %v903
        %936 = vst [vmem:[#allocation2 + $0xc0] sm:$0xff] %v904
        %937 = vst [vmem:[#allocation2 + $0xc8] sm:$0xff] %v905
        %938 = vst [vmem:[#allocation2 + $0xd0] sm:$0xff] %v906
        %939 = vst [vmem:[#allocation2 + $0xd8] sm:$0xff] %v907
        %940 = vst [vmem:[#allocation2 + $0xe0] sm:$0xff] %v908
        %941 = vst [vmem:[#allocation2 + $0xe8] sm:$0xff] %v909
        %942 = vst [vmem:[#allocation2 + $0xf0] sm:$0xff] %v910
        %943 = vst [vmem:[#allocation2 + $0xf8] sm:$0xff] %v911
        %p944 = scmp.eq.s32.totalorder %s30, 1
        // Predicated region
        $region57: #{tpu_custom_call.1} parent=35 // pred_check
          %p945 = pneg %p944
        $region58: #{tpu_custom_call.1} parent=35 // pred_check_branch
          %947 = sbr.rel (%p945) target = $region60
        $region59: #{tpu_custom_call.1} parent=35 // pred_region
          %v948 = vld [vmem:[#allocation2] sm:$0xff]
          %v949 = vld [vmem:[#allocation2 + $0x8] sm:$0xff]
          %v950 = vld [vmem:[#allocation2 + $0x10] sm:$0xff]
          %v951 = vld [vmem:[#allocation2 + $0x18] sm:$0xff]
          %v952 = vld [vmem:[#allocation2 + $0x20] sm:$0xff]
          %v953 = vld [vmem:[#allocation2 + $0x28] sm:$0xff]
          %v954 = vld [vmem:[#allocation2 + $0x30] sm:$0xff]
          %v955 = vld [vmem:[#allocation2 + $0x38] sm:$0xff]
          %v956 = vld [vmem:[#allocation2 + $0x40] sm:$0xff]
          %v957 = vld [vmem:[#allocation2 + $0x48] sm:$0xff]
          %v958 = vld [vmem:[#allocation2 + $0x50] sm:$0xff]
          %v959 = vld [vmem:[#allocation2 + $0x58] sm:$0xff]
          %v960 = vld [vmem:[#allocation2 + $0x60] sm:$0xff]
          %v961 = vld [vmem:[#allocation2 + $0x68] sm:$0xff]
          %v962 = vld [vmem:[#allocation2 + $0x70] sm:$0xff]
          %v963 = vld [vmem:[#allocation2 + $0x78] sm:$0xff]
          %v964 = vld [vmem:[#allocation2 + $0x80] sm:$0xff]
          %v965 = vld [vmem:[#allocation2 + $0x88] sm:$0xff]
          %v966 = vld [vmem:[#allocation2 + $0x90] sm:$0xff]
          %v967 = vld [vmem:[#allocation2 + $0x98] sm:$0xff]
          %v968 = vld [vmem:[#allocation2 + $0xa0] sm:$0xff]
          %v969 = vld [vmem:[#allocation2 + $0xa8] sm:$0xff]
          %v970 = vld [vmem:[#allocation2 + $0xb0] sm:$0xff]
          %v971 = vld [vmem:[#allocation2 + $0xb8] sm:$0xff]
          %v972 = vld [vmem:[#allocation2 + $0xc0] sm:$0xff]
          %v973 = vld [vmem:[#allocation2 + $0xc8] sm:$0xff]
          %v974 = vld [vmem:[#allocation2 + $0xd0] sm:$0xff]
          %v975 = vld [vmem:[#allocation2 + $0xd8] sm:$0xff]
          %v976 = vld [vmem:[#allocation2 + $0xe0] sm:$0xff]
          %v977 = vld [vmem:[#allocation2 + $0xe8] sm:$0xff]
          %v978 = vld [vmem:[#allocation2 + $0xf0] sm:$0xff]
          %v979 = vld [vmem:[#allocation2 + $0xf8] sm:$0xff]
          %v980 = vld [vmem:[%s286] sm:$0xf]
          %v981 = vld [vmem:[%s286 + $0x4] sm:$0xf]
          %v982 = vld [vmem:[%s286 + $0x8] sm:$0xf]
          %v983 = vld [vmem:[%s286 + $0xc] sm:$0xf]
          %v984 = vld [vmem:[%s286 + $0x10] sm:$0xf]
          %v985 = vld [vmem:[%s286 + $0x14] sm:$0xf]
          %v986 = vld [vmem:[%s286 + $0x18] sm:$0xf]
          %v987 = vld [vmem:[%s286 + $0x1c] sm:$0xf]
          %v988 = vld [vmem:[%s286 + $0x20] sm:$0xf]
          %v989 = vld [vmem:[%s286 + $0x24] sm:$0xf]
          %v990 = vld [vmem:[%s286 + $0x28] sm:$0xf]
          %v991 = vld [vmem:[%s286 + $0x2c] sm:$0xf]
          %v992 = vld [vmem:[%s286 + $0x30] sm:$0xf]
          %v993 = vld [vmem:[%s286 + $0x34] sm:$0xf]
          %v994 = vld [vmem:[%s286 + $0x38] sm:$0xf]
          %v995 = vld [vmem:[%s286 + $0x3c] sm:$0xf]
          %v996 = vld [vmem:[%s286 + $0x40] sm:$0xf]
          %v997 = vld [vmem:[%s286 + $0x44] sm:$0xf]
          %v998 = vld [vmem:[%s286 + $0x48] sm:$0xf]
          %v999 = vld [vmem:[%s286 + $0x4c] sm:$0xf]
          %v1000 = vld [vmem:[%s286 + $0x50] sm:$0xf]
          %v1001 = vld [vmem:[%s286 + $0x54] sm:$0xf]
          %v1002 = vld [vmem:[%s286 + $0x58] sm:$0xf]
          %v1003 = vld [vmem:[%s286 + $0x5c] sm:$0xf]
          %v1004 = vld [vmem:[%s286 + $0x60] sm:$0xf]
          %v1005 = vld [vmem:[%s286 + $0x64] sm:$0xf]
          %v1006 = vld [vmem:[%s286 + $0x68] sm:$0xf]
          %v1007 = vld [vmem:[%s286 + $0x6c] sm:$0xf]
          %v1008 = vld [vmem:[%s286 + $0x70] sm:$0xf]
          %v1009 = vld [vmem:[%s286 + $0x74] sm:$0xf]
          %v1010 = vld [vmem:[%s286 + $0x78] sm:$0xf]
          %v1011 = vld [vmem:[%s286 + $0x7c] sm:$0xf]
          %v1012 = vunpack.c.l.bf16 %v980
          %v1013 = vunpack.c.l.bf16 %v981
          %v1014 = vunpack.c.l.bf16 %v982
          %v1015 = vunpack.c.l.bf16 %v983
          %v1016 = vunpack.c.l.bf16 %v984
          %v1017 = vunpack.c.l.bf16 %v985
          %v1018 = vunpack.c.l.bf16 %v986
          %v1019 = vunpack.c.l.bf16 %v987
          %v1020 = vunpack.c.l.bf16 %v988
          %v1021 = vunpack.c.l.bf16 %v989
          %v1022 = vunpack.c.l.bf16 %v990
          %v1023 = vunpack.c.l.bf16 %v991
          %v1024 = vunpack.c.l.bf16 %v992
          %v1025 = vunpack.c.l.bf16 %v993
          %v1026 = vunpack.c.l.bf16 %v994
          %v1027 = vunpack.c.l.bf16 %v995
          %v1028 = vunpack.c.l.bf16 %v996
          %v1029 = vunpack.c.l.bf16 %v997
          %v1030 = vunpack.c.l.bf16 %v998
          %v1031 = vunpack.c.l.bf16 %v999
          %v1032 = vunpack.c.l.bf16 %v1000
          %v1033 = vunpack.c.l.bf16 %v1001
          %v1034 = vunpack.c.l.bf16 %v1002
          %v1035 = vunpack.c.l.bf16 %v1003
          %v1036 = vunpack.c.l.bf16 %v1004
          %v1037 = vunpack.c.l.bf16 %v1005
          %v1038 = vunpack.c.l.bf16 %v1006
          %v1039 = vunpack.c.l.bf16 %v1007
          %v1040 = vunpack.c.l.bf16 %v1008
          %v1041 = vunpack.c.l.bf16 %v1009
          %v1042 = vunpack.c.l.bf16 %v1010
          %v1043 = vunpack.c.l.bf16 %v1011
          %v1044 = vmul.f32 %v948, 0.9
          %v1045 = vmul.f32 %v949, 0.9
          %v1046 = vmul.f32 %v950, 0.9
          %v1047 = vmul.f32 %v951, 0.9
          %v1048 = vmul.f32 %v952, 0.9
          %v1049 = vmul.f32 %v953, 0.9
          %v1050 = vmul.f32 %v954, 0.9
          %v1051 = vmul.f32 %v955, 0.9
          %v1052 = vmul.f32 %v956, 0.9
          %v1053 = vmul.f32 %v957, 0.9
          %v1054 = vmul.f32 %v958, 0.9
          %v1055 = vmul.f32 %v959, 0.9
          %v1056 = vmul.f32 %v960, 0.9
          %v1057 = vmul.f32 %v961, 0.9
          %v1058 = vmul.f32 %v962, 0.9
          %v1059 = vmul.f32 %v963, 0.9
          %v1060 = vmul.f32 %v964, 0.9
          %v1061 = vmul.f32 %v965, 0.9
          %v1062 = vmul.f32 %v966, 0.9
          %v1063 = vmul.f32 %v967, 0.9
          %v1064 = vmul.f32 %v968, 0.9
          %v1065 = vmul.f32 %v969, 0.9
          %v1066 = vmul.f32 %v970, 0.9
          %v1067 = vmul.f32 %v971, 0.9
          %v1068 = vmul.f32 %v972, 0.9
          %v1069 = vmul.f32 %v973, 0.9
          %v1070 = vmul.f32 %v974, 0.9
          %v1071 = vmul.f32 %v975, 0.9
          %v1072 = vmul.f32 %v976, 0.9
          %v1073 = vmul.f32 %v977, 0.9
          %v1074 = vmul.f32 %v978, 0.9
          %v1075 = vmul.f32 %v979, 0.9
          %v1076 = vmul.f32 %v1012, 0.1
          %v1077 = vmul.f32 %v1013, 0.1
          %v1078 = vmul.f32 %v1014, 0.1
          %v1079 = vmul.f32 %v1015, 0.1
          %v1080 = vmul.f32 %v1016, 0.1
          %v1081 = vmul.f32 %v1017, 0.1
          %v1082 = vmul.f32 %v1018, 0.1
          %v1083 = vmul.f32 %v1019, 0.1
          %v1084 = vmul.f32 %v1020, 0.1
          %v1085 = vmul.f32 %v1021, 0.1
          %v1086 = vmul.f32 %v1022, 0.1
          %v1087 = vmul.f32 %v1023, 0.1
          %v1088 = vmul.f32 %v1024, 0.1
          %v1089 = vmul.f32 %v1025, 0.1
          %v1090 = vmul.f32 %v1026, 0.1
          %v1091 = vmul.f32 %v1027, 0.1
          %v1092 = vmul.f32 %v1028, 0.1
          %v1093 = vmul.f32 %v1029, 0.1
          %v1094 = vmul.f32 %v1030, 0.1
          %v1095 = vmul.f32 %v1031, 0.1
          %v1096 = vmul.f32 %v1032, 0.1
          %v1097 = vmul.f32 %v1033, 0.1
          %v1098 = vmul.f32 %v1034, 0.1
          %v1099 = vmul.f32 %v1035, 0.1
          %v1100 = vmul.f32 %v1036, 0.1
          %v1101 = vmul.f32 %v1037, 0.1
          %v1102 = vmul.f32 %v1038, 0.1
          %v1103 = vmul.f32 %v1039, 0.1
          %v1104 = vmul.f32 %v1040, 0.1
          %v1105 = vmul.f32 %v1041, 0.1
          %v1106 = vmul.f32 %v1042, 0.1
          %v1107 = vmul.f32 %v1043, 0.1
          %v1108 = vadd.f32 %v1044, %v1076
          %v1109 = vadd.f32 %v1045, %v1077
          %v1110 = vadd.f32 %v1046, %v1078
          %v1111 = vadd.f32 %v1047, %v1079
          %v1112 = vadd.f32 %v1048, %v1080
          %v1113 = vadd.f32 %v1049, %v1081
          %v1114 = vadd.f32 %v1050, %v1082
          %v1115 = vadd.f32 %v1051, %v1083
          %v1116 = vadd.f32 %v1052, %v1084
          %v1117 = vadd.f32 %v1053, %v1085
          %v1118 = vadd.f32 %v1054, %v1086
          %v1119 = vadd.f32 %v1055, %v1087
          %v1120 = vadd.f32 %v1056, %v1088
          %v1121 = vadd.f32 %v1057, %v1089
          %v1122 = vadd.f32 %v1058, %v1090
          %v1123 = vadd.f32 %v1059, %v1091
          %v1124 = vadd.f32 %v1060, %v1092
          %v1125 = vadd.f32 %v1061, %v1093
          %v1126 = vadd.f32 %v1062, %v1094
          %v1127 = vadd.f32 %v1063, %v1095
          %v1128 = vadd.f32 %v1064, %v1096
          %v1129 = vadd.f32 %v1065, %v1097
          %v1130 = vadd.f32 %v1066, %v1098
          %v1131 = vadd.f32 %v1067, %v1099
          %v1132 = vadd.f32 %v1068, %v1100
          %v1133 = vadd.f32 %v1069, %v1101
          %v1134 = vadd.f32 %v1070, %v1102
          %v1135 = vadd.f32 %v1071, %v1103
          %v1136 = vadd.f32 %v1072, %v1104
          %v1137 = vadd.f32 %v1073, %v1105
          %v1138 = vadd.f32 %v1074, %v1106
          %v1139 = vadd.f32 %v1075, %v1107
          %v1140 = vpack.c.bf16 %v1109, %v1108
          %v1141 = vpack.c.bf16 %v1111, %v1110
          %v1142 = vpack.c.bf16 %v1113, %v1112
          %v1143 = vpack.c.bf16 %v1115, %v1114
          %v1144 = vpack.c.bf16 %v1117, %v1116
          %v1145 = vpack.c.bf16 %v1119, %v1118
          %v1146 = vpack.c.bf16 %v1121, %v1120
          %v1147 = vpack.c.bf16 %v1123, %v1122
          %v1148 = vpack.c.bf16 %v1125, %v1124
          %v1149 = vpack.c.bf16 %v1127, %v1126
          %v1150 = vpack.c.bf16 %v1129, %v1128
          %v1151 = vpack.c.bf16 %v1131, %v1130
          %v1152 = vpack.c.bf16 %v1133, %v1132
          %v1153 = vpack.c.bf16 %v1135, %v1134
          %v1154 = vpack.c.bf16 %v1137, %v1136
          %v1155 = vpack.c.bf16 %v1139, %v1138
          %v1156 = vld [vmem:[#allocation9] sm:$0xf]
          %v1157 = vld [vmem:[#allocation9 + $0x4] sm:$0xf]
          %v1158 = vld [vmem:[#allocation9 + $0x8] sm:$0xf]
          %v1159 = vld [vmem:[#allocation9 + $0xc] sm:$0xf]
          %v1160 = vld [vmem:[#allocation9 + $0x10] sm:$0xf]
          %v1161 = vld [vmem:[#allocation9 + $0x14] sm:$0xf]
          %v1162 = vld [vmem:[#allocation9 + $0x18] sm:$0xf]
          %v1163 = vld [vmem:[#allocation9 + $0x1c] sm:$0xf]
          %v1164 = vld [vmem:[#allocation9 + $0x20] sm:$0xf]
          %v1165 = vld [vmem:[#allocation9 + $0x24] sm:$0xf]
          %v1166 = vld [vmem:[#allocation9 + $0x28] sm:$0xf]
          %v1167 = vld [vmem:[#allocation9 + $0x2c] sm:$0xf]
          %v1168 = vld [vmem:[#allocation9 + $0x30] sm:$0xf]
          %v1169 = vld [vmem:[#allocation9 + $0x34] sm:$0xf]
          %v1170 = vld [vmem:[#allocation9 + $0x38] sm:$0xf]
          %v1171 = vld [vmem:[#allocation9 + $0x3c] sm:$0xf]
          %v1188 = vunpack.c.l.b16 %v1156
          %v1189 = vunpack.c.l.b16 %v1157
          %v1190 = vunpack.c.l.b16 %v1158
          %v1191 = vunpack.c.l.b16 %v1159
          %v1192 = vunpack.c.l.b16 %v1160
          %v1193 = vunpack.c.l.b16 %v1161
          %v1194 = vunpack.c.l.b16 %v1162
          %v1195 = vunpack.c.l.b16 %v1163
          %v1196 = vunpack.c.l.b16 %v1164
          %v1197 = vunpack.c.l.b16 %v1165
          %v1198 = vunpack.c.l.b16 %v1166
          %v1199 = vunpack.c.l.b16 %v1167
          %v1200 = vunpack.c.l.b16 %v1168
          %v1201 = vunpack.c.l.b16 %v1169
          %v1202 = vunpack.c.l.b16 %v1170
          %v1203 = vunpack.c.l.b16 %v1171
          %v1204 = vpack.c.b16 %v1189, %v1188
          %v1205 = vpack.c.b16 %v1191, %v1190
          %v1206 = vpack.c.b16 %v1193, %v1192
          %v1207 = vpack.c.b16 %v1195, %v1194
          %v1208 = vpack.c.b16 %v1197, %v1196
          %v1209 = vpack.c.b16 %v1199, %v1198
          %v1210 = vpack.c.b16 %v1201, %v1200
          %v1211 = vpack.c.b16 %v1203, %v1202
          %1220 = vmatprep.subr.bf16.mxu0 0
          %1221 = vmatpush1.bf16.msra.mxu0 %v1204
          %1222 = vmatprep.subr.bf16.mxu0 0
          %1223 = vmatpush1.bf16.msra.mxu0 %v1205
          %1224 = vmatprep.subr.bf16.mxu0 0
          %1225 = vmatpush1.bf16.msra.mxu0 %v1206
          %1226 = vmatprep.subr.bf16.mxu0 0
          %1227 = vmatpush1.bf16.msra.mxu0 %v1207
          %1228 = vmatprep.subr.bf16.mxu0 0
          %1229 = vmatpush1.bf16.msra.mxu0 %v1208
          %1230 = vmatprep.subr.bf16.mxu0 0
          %1231 = vmatpush1.bf16.msra.mxu0 %v1209
          %1232 = vmatprep.subr.bf16.mxu0 0
          %1233 = vmatpush1.bf16.msra.mxu0 %v1210
          %1234 = vmatprep.subr.bf16.mxu0 0
          %1235 = vmatpush1.bf16.msra.mxu0 %v1211
          %1236 = vmatprep.subr.bf16.mxu0 0
          %1237 = vmatpush1.bf16.msra.mxu0 0
          %1238 = vmatprep.subr.bf16.mxu0 0
          %1239 = vmatpush1.bf16.msra.mxu0 0
          %1240 = vmatprep.subr.bf16.mxu0 0
          %1241 = vmatpush1.bf16.msra.mxu0 0
          %1242 = vmatprep.subr.bf16.mxu0 0
          %1243 = vmatpush1.bf16.msra.mxu0 0
          %1244 = vmatprep.subr.bf16.mxu0 0
          %1245 = vmatpush1.bf16.msra.mxu0 0
          %1246 = vmatprep.subr.bf16.mxu0 0
          %1247 = vmatpush1.bf16.msra.mxu0 0
          %1248 = vmatprep.subr.bf16.mxu0 0
          %1249 = vmatpush1.bf16.msra.mxu0 0
          %1250 = vmatprep.subr.bf16.mxu0 0
          %1251 = vmatpush1.bf16.msra.mxu0 0
          %1252 = vmatprep.mubr.bf16.mxu0 0
          %1253 = vmatmul.mubr.bf16.gmra.mrb[0].mxu0 %v1140
          %v1254 = vpop.f32.mrb[0].mxu0
          %v1255 = vadd.f32 0.0, %v1254
          %v1256 = vpop.f32.mrb[0].mxu0
          %v1257 = vpop.f32.mrb[0].mxu0
          %v1258 = vadd.f32 0.0, %v1257
          %v1259 = vpop.f32.mrb[0].mxu0
          %1260 = vmatprep.mubr.bf16.mxu0 0
          %1261 = vmatmul.mubr.bf16.gmra.mrb[0].mxu0 %v1141
          %v1262 = vpop.f32.mrb[0].mxu0
          %v1263 = vadd.f32 0.0, %v1262
          %v1264 = vpop.f32.mrb[0].mxu0
          %v1265 = vpop.f32.mrb[0].mxu0
          %v1266 = vadd.f32 0.0, %v1265
          %v1267 = vpop.f32.mrb[0].mxu0
          %1268 = vmatprep.mubr.bf16.mxu0 0
          %1269 = vmatmul.mubr.bf16.gmra.mrb[0].mxu0 %v1142
          %v1270 = vpop.f32.mrb[0].mxu0
          %v1271 = vadd.f32 0.0, %v1270
          %v1272 = vpop.f32.mrb[0].mxu0
          %v1273 = vpop.f32.mrb[0].mxu0
          %v1274 = vadd.f32 0.0, %v1273
          %v1275 = vpop.f32.mrb[0].mxu0
          %1276 = vmatprep.mubr.bf16.mxu0 0
          %1277 = vmatmul.mubr.bf16.gmra.mrb[0].mxu0 %v1143
          %v1278 = vpop.f32.mrb[0].mxu0
          %v1279 = vadd.f32 0.0, %v1278
          %v1280 = vpop.f32.mrb[0].mxu0
          %v1281 = vpop.f32.mrb[0].mxu0
          %v1282 = vadd.f32 0.0, %v1281
          %v1283 = vpop.f32.mrb[0].mxu0
          %1284 = vmatprep.mubr.bf16.mxu0 0
          %1285 = vmatmul.mubr.bf16.gmra.mrb[0].mxu0 %v1144
          %v1286 = vpop.f32.mrb[0].mxu0
          %v1287 = vadd.f32 0.0, %v1286
          %v1288 = vpop.f32.mrb[0].mxu0
          %v1289 = vpop.f32.mrb[0].mxu0
          %v1290 = vadd.f32 0.0, %v1289
          %v1291 = vpop.f32.mrb[0].mxu0
          %1292 = vmatprep.mubr.bf16.mxu0 0
          %1293 = vmatmul.mubr.bf16.gmra.mrb[0].mxu0 %v1145
          %v1294 = vpop.f32.mrb[0].mxu0
          %v1295 = vadd.f32 0.0, %v1294
          %v1296 = vpop.f32.mrb[0].mxu0
          %v1297 = vpop.f32.mrb[0].mxu0
          %v1298 = vadd.f32 0.0, %v1297
          %v1299 = vpop.f32.mrb[0].mxu0
          %1300 = vmatprep.mubr.bf16.mxu0 0
          %1301 = vmatmul.mubr.bf16.gmra.mrb[0].mxu0 %v1146
          %v1302 = vpop.f32.mrb[0].mxu0
          %v1303 = vadd.f32 0.0, %v1302
          %v1304 = vpop.f32.mrb[0].mxu0
          %v1305 = vpop.f32.mrb[0].mxu0
          %v1306 = vadd.f32 0.0, %v1305
          %v1307 = vpop.f32.mrb[0].mxu0
          %1308 = vmatprep.mubr.bf16.mxu0 0
          %1309 = vmatmul.mubr.bf16.gmra.mrb[0].mxu0 %v1147
          %v1310 = vpop.f32.mrb[0].mxu0
          %v1311 = vadd.f32 0.0, %v1310
          %v1312 = vpop.f32.mrb[0].mxu0
          %v1313 = vpop.f32.mrb[0].mxu0
          %v1314 = vadd.f32 0.0, %v1313
          %v1315 = vpop.f32.mrb[0].mxu0
          %1316 = vmatprep.mubr.bf16.mxu0 0
          %1317 = vmatmul.mubr.bf16.gmra.mrb[0].mxu0 %v1148
          %v1318 = vpop.f32.mrb[0].mxu0
          %v1319 = vadd.f32 0.0, %v1318
          %v1320 = vpop.f32.mrb[0].mxu0
          %v1321 = vpop.f32.mrb[0].mxu0
          %v1322 = vadd.f32 0.0, %v1321
          %v1323 = vpop.f32.mrb[0].mxu0
          %1324 = vmatprep.mubr.bf16.mxu0 0
          %1325 = vmatmul.mubr.bf16.gmra.mrb[0].mxu0 %v1149
          %v1326 = vpop.f32.mrb[0].mxu0
          %v1327 = vadd.f32 0.0, %v1326
          %v1328 = vpop.f32.mrb[0].mxu0
          %v1329 = vpop.f32.mrb[0].mxu0
          %v1330 = vadd.f32 0.0, %v1329
          %v1331 = vpop.f32.mrb[0].mxu0
          %1332 = vmatprep.mubr.bf16.mxu0 0
          %1333 = vmatmul.mubr.bf16.gmra.mrb[0].mxu0 %v1150
          %v1334 = vpop.f32.mrb[0].mxu0
          %v1335 = vadd.f32 0.0, %v1334
          %v1336 = vpop.f32.mrb[0].mxu0
          %v1337 = vpop.f32.mrb[0].mxu0
          %v1338 = vadd.f32 0.0, %v1337
          %v1339 = vpop.f32.mrb[0].mxu0
          %1340 = vmatprep.mubr.bf16.mxu0 0
          %1341 = vmatmul.mubr.bf16.gmra.mrb[0].mxu0 %v1151
          %v1342 = vpop.f32.mrb[0].mxu0
          %v1343 = vadd.f32 0.0, %v1342
          %v1344 = vpop.f32.mrb[0].mxu0
          %v1345 = vpop.f32.mrb[0].mxu0
          %v1346 = vadd.f32 0.0, %v1345
          %v1347 = vpop.f32.mrb[0].mxu0
          %1348 = vmatprep.mubr.bf16.mxu0 0
          %1349 = vmatmul.mubr.bf16.gmra.mrb[0].mxu0 %v1152
          %v1350 = vpop.f32.mrb[0].mxu0
          %v1351 = vadd.f32 0.0, %v1350
          %v1352 = vpop.f32.mrb[0].mxu0
          %v1353 = vpop.f32.mrb[0].mxu0
          %v1354 = vadd.f32 0.0, %v1353
          %v1355 = vpop.f32.mrb[0].mxu0
          %1356 = vmatprep.mubr.bf16.mxu0 0
          %1357 = vmatmul.mubr.bf16.gmra.mrb[0].mxu0 %v1153
          %v1358 = vpop.f32.mrb[0].mxu0
          %v1359 = vadd.f32 0.0, %v1358
          %v1360 = vpop.f32.mrb[0].mxu0
          %v1361 = vpop.f32.mrb[0].mxu0
          %v1362 = vadd.f32 0.0, %v1361
          %v1363 = vpop.f32.mrb[0].mxu0
          %1364 = vmatprep.mubr.bf16.mxu0 0
          %1365 = vmatmul.mubr.bf16.gmra.mrb[0].mxu0 %v1154
          %v1366 = vpop.f32.mrb[0].mxu0
          %v1367 = vadd.f32 0.0, %v1366
          %v1368 = vpop.f32.mrb[0].mxu0
          %v1369 = vpop.f32.mrb[0].mxu0
          %v1370 = vadd.f32 0.0, %v1369
          %v1371 = vpop.f32.mrb[0].mxu0
          %1372 = vmatprep.mubr.bf16.mxu0 0
          %1373 = vmatmul.mubr.bf16.gmra.mrb[0].mxu0 %v1155
          %v1374 = vpop.f32.mrb[0].mxu0
          %v1375 = vadd.f32 0.0, %v1374
          %v1376 = vpop.f32.mrb[0].mxu0
          %v1377 = vpop.f32.mrb[0].mxu0
          %v1378 = vadd.f32 0.0, %v1377
          %v1379 = vpop.f32.mrb[0].mxu0
          %1380 = vdwg.mxu0
          %v1381 = vmul.f32 %v1255, 0.22314355
          %v1382 = vmul.f32 %v1258, 0.22314355
          %v1383 = vmul.f32 %v1263, 0.22314355
          %v1384 = vmul.f32 %v1266, 0.22314355
          %v1385 = vmul.f32 %v1271, 0.22314355
          %v1386 = vmul.f32 %v1274, 0.22314355
          %v1387 = vmul.f32 %v1279, 0.22314355
          %v1388 = vmul.f32 %v1282, 0.22314355
          %v1389 = vmul.f32 %v1287, 0.22314355
          %v1390 = vmul.f32 %v1290, 0.22314355
          %v1391 = vmul.f32 %v1295, 0.22314355
          %v1392 = vmul.f32 %v1298, 0.22314355
          %v1393 = vmul.f32 %v1303, 0.22314355
          %v1394 = vmul.f32 %v1306, 0.22314355
          %v1395 = vmul.f32 %v1311, 0.22314355
          %v1396 = vmul.f32 %v1314, 0.22314355
          %v1397 = vmul.f32 %v1319, 0.22314355
          %v1398 = vmul.f32 %v1322, 0.22314355
          %v1399 = vmul.f32 %v1327, 0.22314355
          %v1400 = vmul.f32 %v1330, 0.22314355
          %v1401 = vmul.f32 %v1335, 0.22314355
          %v1402 = vmul.f32 %v1338, 0.22314355
          %v1403 = vmul.f32 %v1343, 0.22314355
          %v1404 = vmul.f32 %v1346, 0.22314355
          %v1405 = vmul.f32 %v1351, 0.22314355
          %v1406 = vmul.f32 %v1354, 0.22314355
          %v1407 = vmul.f32 %v1359, 0.22314355
          %v1408 = vmul.f32 %v1362, 0.22314355
          %v1409 = vmul.f32 %v1367, 0.22314355
          %v1410 = vmul.f32 %v1370, 0.22314355
          %v1411 = vmul.f32 %v1375, 0.22314355
          %v1412 = vmul.f32 %v1378, 0.22314355
          %v1413 = vmul.f32 %v1108, 0.7768564
          %v1414 = vmul.f32 %v1109, 0.7768564
          %v1415 = vmul.f32 %v1110, 0.7768564
          %v1416 = vmul.f32 %v1111, 0.7768564
          %v1417 = vmul.f32 %v1112, 0.7768564
          %v1418 = vmul.f32 %v1113, 0.7768564
          %v1419 = vmul.f32 %v1114, 0.7768564
          %v1420 = vmul.f32 %v1115, 0.7768564
          %v1421 = vmul.f32 %v1116, 0.7768564
          %v1422 = vmul.f32 %v1117, 0.7768564
          %v1423 = vmul.f32 %v1118, 0.7768564
          %v1424 = vmul.f32 %v1119, 0.7768564
          %v1425 = vmul.f32 %v1120, 0.7768564
          %v1426 = vmul.f32 %v1121, 0.7768564
          %v1427 = vmul.f32 %v1122, 0.7768564
          %v1428 = vmul.f32 %v1123, 0.7768564
          %v1429 = vmul.f32 %v1124, 0.7768564
          %v1430 = vmul.f32 %v1125, 0.7768564
          %v1431 = vmul.f32 %v1126, 0.7768564
          %v1432 = vmul.f32 %v1127, 0.7768564
          %v1433 = vmul.f32 %v1128, 0.7768564
          %v1434 = vmul.f32 %v1129, 0.7768564
          %v1435 = vmul.f32 %v1130, 0.7768564
          %v1436 = vmul.f32 %v1131, 0.7768564
          %v1437 = vmul.f32 %v1132, 0.7768564
          %v1438 = vmul.f32 %v1133, 0.7768564
          %v1439 = vmul.f32 %v1134, 0.7768564
          %v1440 = vmul.f32 %v1135, 0.7768564
          %v1441 = vmul.f32 %v1136, 0.7768564
          %v1442 = vmul.f32 %v1137, 0.7768564
          %v1443 = vmul.f32 %v1138, 0.7768564
          %v1444 = vmul.f32 %v1139, 0.7768564
          %v1445 = vadd.f32 %v1381, %v1413
          %v1446 = vadd.f32 %v1382, %v1414
          %v1447 = vadd.f32 %v1383, %v1415
          %v1448 = vadd.f32 %v1384, %v1416
          %v1449 = vadd.f32 %v1385, %v1417
          %v1450 = vadd.f32 %v1386, %v1418
          %v1451 = vadd.f32 %v1387, %v1419
          %v1452 = vadd.f32 %v1388, %v1420
          %v1453 = vadd.f32 %v1389, %v1421
          %v1454 = vadd.f32 %v1390, %v1422
          %v1455 = vadd.f32 %v1391, %v1423
          %v1456 = vadd.f32 %v1392, %v1424
          %v1457 = vadd.f32 %v1393, %v1425
          %v1458 = vadd.f32 %v1394, %v1426
          %v1459 = vadd.f32 %v1395, %v1427
          %v1460 = vadd.f32 %v1396, %v1428
          %v1461 = vadd.f32 %v1397, %v1429
          %v1462 = vadd.f32 %v1398, %v1430
          %v1463 = vadd.f32 %v1399, %v1431
          %v1464 = vadd.f32 %v1400, %v1432
          %v1465 = vadd.f32 %v1401, %v1433
          %v1466 = vadd.f32 %v1402, %v1434
          %v1467 = vadd.f32 %v1403, %v1435
          %v1468 = vadd.f32 %v1404, %v1436
          %v1469 = vadd.f32 %v1405, %v1437
          %v1470 = vadd.f32 %v1406, %v1438
          %v1471 = vadd.f32 %v1407, %v1439
          %v1472 = vadd.f32 %v1408, %v1440
          %v1473 = vadd.f32 %v1409, %v1441
          %v1474 = vadd.f32 %v1410, %v1442
          %v1475 = vadd.f32 %v1411, %v1443
          %v1476 = vadd.f32 %v1412, %v1444
          %1477 = vst [vmem:[%s324] sm:$0xff] %v1445
          %1478 = vst [vmem:[%s324 + $0x8] sm:$0xff] %v1446
          %1479 = vst [vmem:[%s324 + $0x10] sm:$0xff] %v1447
          %1480 = vst [vmem:[%s324 + $0x18] sm:$0xff] %v1448
          %1481 = vst [vmem:[%s324 + $0x20] sm:$0xff] %v1449
          %1482 = vst [vmem:[%s324 + $0x28] sm:$0xff] %v1450
          %1483 = vst [vmem:[%s324 + $0x30] sm:$0xff] %v1451
          %1484 = vst [vmem:[%s324 + $0x38] sm:$0xff] %v1452
          %1485 = vst [vmem:[%s324 + $0x40] sm:$0xff] %v1453
          %1486 = vst [vmem:[%s324 + $0x48] sm:$0xff] %v1454
          %1487 = vst [vmem:[%s324 + $0x50] sm:$0xff] %v1455
          %1488 = vst [vmem:[%s324 + $0x58] sm:$0xff] %v1456
          %1489 = vst [vmem:[%s324 + $0x60] sm:$0xff] %v1457
          %1490 = vst [vmem:[%s324 + $0x68] sm:$0xff] %v1458
          %1491 = vst [vmem:[%s324 + $0x70] sm:$0xff] %v1459
          %1492 = vst [vmem:[%s324 + $0x78] sm:$0xff] %v1460
          %1493 = vst [vmem:[%s324 + $0x80] sm:$0xff] %v1461
          %1494 = vst [vmem:[%s324 + $0x88] sm:$0xff] %v1462
          %1495 = vst [vmem:[%s324 + $0x90] sm:$0xff] %v1463
          %1496 = vst [vmem:[%s324 + $0x98] sm:$0xff] %v1464
          %1497 = vst [vmem:[%s324 + $0xa0] sm:$0xff] %v1465
          %1498 = vst [vmem:[%s324 + $0xa8] sm:$0xff] %v1466
          %1499 = vst [vmem:[%s324 + $0xb0] sm:$0xff] %v1467
          %1500 = vst [vmem:[%s324 + $0xb8] sm:$0xff] %v1468
          %1501 = vst [vmem:[%s324 + $0xc0] sm:$0xff] %v1469
          %1502 = vst [vmem:[%s324 + $0xc8] sm:$0xff] %v1470
          %1503 = vst [vmem:[%s324 + $0xd0] sm:$0xff] %v1471
          %1504 = vst [vmem:[%s324 + $0xd8] sm:$0xff] %v1472
          %1505 = vst [vmem:[%s324 + $0xe0] sm:$0xff] %v1473
          %1506 = vst [vmem:[%s324 + $0xe8] sm:$0xff] %v1474
          %1507 = vst [vmem:[%s324 + $0xf0] sm:$0xff] %v1475
          %1508 = vst [vmem:[%s324 + $0xf8] sm:$0xff] %v1476
        $region60: #{tpu_custom_call.1} parent=35 // pred_fallthru
          _
        %s1509 = sand.u32 %s146, 1
        %s1510 = scalar_lea.sflag [#allocation5], %s1509
        %s1511 = sand.u32 %s146, 1
        %s1512 = smul.addr %s1511, 256
        %s1513 = scalar_lea.vmem [#allocation11], %s1512
        // Predicated region
        $region61: #{tpu_custom_call.1} parent=35 // pred_check
          %p1514 = pneg %p156
        $region62: #{tpu_custom_call.1} parent=35 // pred_check_branch
          %1516 = sbr.rel (%p1514) target = $region64
        $region63: #{tpu_custom_call.1} parent=35 // pred_region
          %s1517 = smul.u32 32, %s29
          %s1519 = ssub.s32 4096, 4096
          %1520 = vsyncadd %s1510, %s1519
          %s1521 = smul.addr %s1517, 128
          %s1522 = scalar_lea.hbm %s4, %s1521
          %s1523 = sshll.u32 %s1513, 4
          %s1524 = int_to_ptr.vmem [resolvable:$true] %s1523
          %1529 = dma.vmem_to_hbm [thread:$0]  %s1524, 4096, %s1522, %s1510, 128, 128, 8
        $region64: #{tpu_custom_call.1} parent=35 // pred_fallthru
          _
      $region36: #{tpu_custom_call.1} parent=5 // pred_fallthru
        _
      %p1530 = scmp.le.s32.totalorder 2, %s20
      // Predicated region
      $region65: #{tpu_custom_call.1} parent=5 // pred_check
        %p1531 = pneg %p1530
      $region66: #{tpu_custom_call.1} parent=5 // pred_check_branch
        %1533 = sbr.rel (%p1531) target = $region68
      $region67: #{tpu_custom_call.1} parent=5 // pred_region
        %s1534 = ssub.s32 %s20, 2
        // Predicated region
        $region69: #{tpu_custom_call.1} parent=67 // pred_check
          %p1535 = pneg %p162
        $region70: #{tpu_custom_call.1} parent=67 // pred_check_branch
          %1537 = sbr.rel (%p1535) target = $region72
        $region71: #{tpu_custom_call.1} parent=67 // pred_region
          %s1538 = sand.u32 %s147, 1
          %s1539 = scalar_lea.sflag [#allocation5], %s1538
          %s1540 = sand.u32 %s147, 1
          %s1541 = smul.addr %s1540, 256
          %s1542 = scalar_lea.vmem [#allocation11], %s1541
          %1543 = dma.done %s1539, 4096
        $region72: #{tpu_custom_call.1} parent=67 // pred_fallthru
          _
      $region68: #{tpu_custom_call.1} parent=5 // pred_fallthru
        _
    $region6: #{tpu_custom_call.1} parent=1 // loop_footer
      %s24 = sadd.s32 1, %s20
    $region7: #{tpu_custom_call.1} parent=1 // loop_footer_branch
      %19 = sbr.rel target = $region3
    $region8: #{tpu_custom_call.1} parent=1 // loop_exit
      _
    %1544 = vsyncpa [#allocation4], 1
    %s1545 = scalar_lea.sflag [#allocation4], 1
    %1546 = vsyncpa %s1545, 1
    %1547 = vsyncpa [#allocation7], 1
    %s1548 = scalar_lea.sflag [#allocation7], 1
    %1549 = vsyncpa %s1548, 1
    %1550 = vsyncpa [#allocation10], 1
    %1551 = vsyncpa [#allocation5], 1
    %s1552 = scalar_lea.sflag [#allocation5], 1
    %1553 = vsyncpa %s1552, 1

</llo_original>
